<compile_context>
chip_gen: v6e
topology: v6e:2x2x1
jax: 0.10.0
libtpu: 0.0.40
codegen_flags: <defaults>
</compile_context>

<pallas_src>
import jax
import jax.numpy as jnp
from jax import lax
from jax.experimental import pallas as pl
from jax.experimental.pallas import tpu as pltpu

_PAD = 128  # lane slack each side of the staging buffer; must be >= W + 1


def make_basic_block_kernel(H, W, CP, B_blk):
    HW = H * W
    L = B_blk * HW
    K = 9 * CP + CP          # 9 channel-padded tap slots + 1 constant (bias) slot
    TAPS = [(dy, dx) for dy in (-1, 0, 1) for dx in (-1, 0, 1)]
    assert _PAD >= W + 1
    pow2 = (W & (W - 1)) == 0 and (H & (H - 1)) == 0

    def kernel(x_ref, w1_ref, w2_ref, out_ref, xs_ref, patch_ref):
        # x_ref:     (CP, L)  channel-padded, batch-packed input (also residual)
        # w1_ref:    (CP, K)  conv1 weights, tap-major, BN1 scale folded, + bias col
        # w2_ref:    (CP, K)  conv2 weights, tap-major, BN2 scale folded, + bias col
        # out_ref:   (CP, L)
        # xs_ref:    VMEM (CP, _PAD+L+_PAD) staging for the 9 lane-shifted views.
        #            Halos are never initialized: every lane that would read them
        #            is masked off below (pure select, no arithmetic), so their
        #            garbage contents are dead.
        # patch_ref: VMEM (K, L) im2col matrix shared by both convs.

        # ---- per-tap validity masks -------------------------------------------
        # Lanes are the flattened (image, y, x) index.  A shift of s = dy*W + dx
        # reads the correct in-image neighbour iff 0 <= y+dy < H and 0 <= x+dx < W;
        # every other lane (image border wrap, cross-image bleed along the packed
        # lane axis, halo reads) must contribute the conv's zero padding instead.
        idx = lax.broadcasted_iota(jnp.int32, (1, L), 1)
        if pow2:
            col = idx & (W - 1)
            row = (idx >> (W.bit_length() - 1)) & (H - 1)
        else:
            col = idx % W
            row = (idx // W) % H
        row_ok = {-1: row >= 1, 0: None, 1: row <= H - 2}
        col_ok = {-1: col >= 1, 0: None, 1: col <= W - 2}

        def tap_mask(dy, dx):
            r, c = row_ok[dy], col_ok[dx]
            if r is None:
                return c
            if c is None:
                return r
            return jnp.logical_and(r, c)

        # Constant slot: ones row feeding the folded-bias weight column, zero
        # rows below it (so no uninitialized scratch ever reaches the MXU).
        sub = lax.broadcasted_iota(jnp.int32, (CP, L), 0)
        patch_ref[pl.ds(9 * CP, CP), :] = jnp.where(sub == 0, 1.0, 0.0).astype(jnp.float32)

        def im2col(src):
            # src: (CP, L) in registers.  Stage it once, then read 9 lane-shifted
            # views; every tap-slot store is a full (8, L) sublane-aligned vst.
            xs_ref[:, pl.ds(_PAD, L)] = src
            for t, (dy, dx) in enumerate(TAPS):
                s = dy * W + dx
                piece = src if s == 0 else xs_ref[:, pl.ds(_PAD + s, L)]
                m = tap_mask(dy, dx)
                if m is not None:
                    piece = jnp.where(m, piece, 0.0)
                patch_ref[pl.ds(t * CP, CP), :] = piece

        x = x_ref[...]                                            # (CP, L)

        # ---- conv1 (+ folded BN1 scale & shift) + ReLU: one MXU contraction ----
        im2col(x)
        h1 = jnp.dot(w1_ref[...], patch_ref[...],
                     preferred_element_type=jnp.float32)          # (CP, L)
        h1 = jnp.maximum(h1, 0.0)

        # ---- conv2 (+ folded BN2 scale & shift) ----
        im2col(h1)
        h2 = jnp.dot(w2_ref[...], patch_ref[...],
                     preferred_element_type=jnp.float32)          # (CP, L)

        # ---- identity shortcut + ReLU: single lane-dense store ----
        out_ref[...] = jnp.maximum(h2 + x, 0.0).astype(out_ref.dtype)

    return kernel


def basic_block_forward(x_nchw, w1_oihw, bn1, w2_oihw, bn2, eps=1e-5):
    """x_nchw: (N, C, H, W) float32 -> (N, C, H, W).  Eval-mode BatchNorm."""
    N, C, H, W = x_nchw.shape
    assert w1_oihw.shape == (C, C, 3, 3) and w2_oihw.shape == (C, C, 3, 3), \
        "identity-shortcut path (stride=1, in_channels == out_channels)"
    HW = H * W
    CP = ((C + 7) // 8) * 8            # channels padded to the sublane tile

    # Pack B_blk images per grid step along the lane axis (largest divisor of N
    # that is <= 8).  TODO(synk): on v7x cap this so the grid length stays >= 2
    # and mark the batch axis CORE_PARALLEL to split it across both TensorCores.
    B_blk = 1
    for b in range(min(N, 8), 0, -1):
        if N % b == 0:
            B_blk = b
            break
    G = N // B_blk
    L = B_blk * HW
    assert L % 128 == 0, "packed lane extent must be a multiple of the lane tile"

    # Layout plumbing (XLA side): (N,C,H,W) -> (G, CP, B_blk*HW) with C on
    # sublanes (zero-padded to CP) and the packed spatial axis lane-dense.
    x = x_nchw.astype(jnp.float32).reshape(G, B_blk, C, HW)
    x = jnp.transpose(x, (0, 2, 1, 3)).reshape(G, C, L)
    x = jnp.pad(x, ((0, 0), (0, CP - C), (0, 0)))

    def fold_bn(bn):
        gamma, beta, mean, var = bn
        scale = gamma / jnp.sqrt(var + eps)
        shift = beta - mean * scale
        return scale.astype(jnp.float32), shift.astype(jnp.float32)

    K = 9 * CP + CP

    def weight_mat(w_oihw, scale, shift):
        # OIHW -> tap-major (C, 9, Cin), BN scale folded per output channel,
        # input channels padded to CP per tap slot, then one extra CP-wide slot
        # whose first column carries the BN shift (fed by the constant ones row
        # of the im2col patch).  Output rows padded to CP.
        m = jnp.transpose(w_oihw, (0, 2, 3, 1)).reshape(C, 9, C) * scale[:, None, None]
        m = jnp.pad(m, ((0, 0), (0, 0), (0, CP - C))).reshape(C, 9 * CP)
        bias_cols = jnp.zeros((C, CP), jnp.float32).at[:, 0].set(shift)
        w = jnp.concatenate([m, bias_cols], axis=1)          # (C, K)
        return jnp.pad(w, ((0, CP - C), (0, 0))).astype(jnp.float32)

    s1, b1 = fold_bn(bn1)
    s2, b2 = fold_bn(bn2)
    w1_m = weight_mat(w1_oihw.astype(jnp.float32), s1, b1)
    w2_m = weight_mat(w2_oihw.astype(jnp.float32), s2, b2)

    kernel = make_basic_block_kernel(H, W, CP, B_blk)

    flops = int(G * 2 * 2 * CP * K * L)                      # two matmuls / step
    bytes_accessed = int(4 * (x.size + G * CP * L + w1_m.size + w2_m.size))

    out = pl.pallas_call(
        kernel,
        out_shape=jax.ShapeDtypeStruct((G, CP, L), jnp.float32),
        grid_spec=pltpu.PrefetchScalarGridSpec(
            num_scalar_prefetch=0,
            grid=(G,),
            in_specs=[
                pl.BlockSpec((None, CP, L), lambda g: (g, 0, 0)),   # packed x
                pl.BlockSpec((CP, K), lambda g: (0, 0)),            # w1 (+bias col)
                pl.BlockSpec((CP, K), lambda g: (0, 0)),            # w2 (+bias col)
            ],
            out_specs=pl.BlockSpec((None, CP, L), lambda g: (g, 0, 0)),
            scratch_shapes=[
                pltpu.VMEM((CP, _PAD + L + _PAD), jnp.float32),  # shift staging
                pltpu.VMEM((K, L), jnp.float32),                 # im2col patch
            ],
        ),
        compiler_params=pltpu.CompilerParams(
            dimension_semantics=("parallel",)),
        cost_estimate=pl.CostEstimate(
            flops=flops, transcendentals=0, bytes_accessed=bytes_accessed),
    )(x, w1_m, w2_m)

    # Undo the packing: (G, CP, L) -> (N, C, H, W)
    out = out[:, :C, :].reshape(G, C, B_blk, HW)
    out = jnp.transpose(out, (0, 2, 1, 3)).reshape(N, C, H, W)
    return out


def _reference(x_nchw, w1, bn1, w2, bn2, eps=1e-5):
    """Pure-JAX reference (eval-mode BatchNorm) for validation."""
    x = jnp.transpose(x_nchw, (0, 2, 3, 1))

    def conv(y, w_oihw):
        w_hwio = jnp.transpose(w_oihw, (2, 3, 1, 0))
        return lax.conv_general_dilated(
            y, w_hwio, window_strides=(1, 1), padding=((1, 1), (1, 1)),
            dimension_numbers=("NHWC", "HWIO", "NHWC"))

    def bn(y, p):
        gamma, beta, mean, var = p
        return gamma * (y - mean) / jnp.sqrt(var + eps) + beta

    h = jax.nn.relu(bn(conv(x, w1), bn1))
    h = bn(conv(h, w2), bn2)
    out = jax.nn.relu(h + x)
    return jnp.transpose(out, (0, 3, 1, 2))


if __name__ == "__main__":
    # BasicBlock(in_channels=4, out_channels=4, stride=1, use_se=False)
    N, C, H, W = 2, 4, 16, 16
    key = jax.random.PRNGKey(0)
    ks = jax.random.split(key, 11)

    x = jax.random.normal(ks[0], (N, C, H, W), jnp.float32)

    # conv weights (PyTorch OIHW layout), deterministic init
    w1 = jax.random.normal(ks[1], (C, C, 3, 3), jnp.float32) * 0.1
    w2 = jax.random.normal(ks[2], (C, C, 3, 3), jnp.float32) * 0.1

    # eval-mode BatchNorm params: (gamma, beta, running_mean, running_var)
    bn1 = (jax.random.uniform(ks[3], (C,), minval=0.5, maxval=1.5),
           jax.random.normal(ks[4], (C,)) * 0.1,
           jax.random.normal(ks[5], (C,)) * 0.1,
           jax.random.uniform(ks[6], (C,), minval=0.5, maxval=1.5))
    bn2 = (jax.random.uniform(ks[7], (C,), minval=0.5, maxval=1.5),
           jax.random.normal(ks[8], (C,)) * 0.1,
           jax.random.normal(ks[9], (C,)) * 0.1,
           jax.random.uniform(ks[10], (C,), minval=0.5, maxval=1.5))

    out = basic_block_forward(x, w1, bn1, w2, bn2)
    out = jax.block_until_ready(out)

    ref = _reference(x, w1, bn1, w2, bn2)
    assert out.shape == (N, C, H, W)
    assert jnp.allclose(out, ref, rtol=1e-4, atol=1e-4), \
        float(jnp.max(jnp.abs(out - ref)))

    print("KERNEL_OK")
</pallas_src>

<mosaic_0001>
module attributes {stable_mosaic.version = 11 : i64} {
  func.func @kernel(%arg0: i32, %arg1: memref<1x8x512xf32, #tpu.memory_space<vmem>>, %arg2: memref<8x80xf32, #tpu.memory_space<vmem>>, %arg3: memref<8x80xf32, #tpu.memory_space<vmem>>, %arg4: memref<1x8x512xf32, #tpu.memory_space<vmem>>, %arg5: memref<8x768xf32, #tpu.memory_space<vmem>>, %arg6: memref<80x512xf32, #tpu.memory_space<vmem>>) attributes {dimension_semantics = [#tpu.dimension_semantics<parallel>], iteration_bounds = array<i64: 1>, scalar_prefetch = 0 : i64, scratch_operands = 2 : i64, tpu.core_type = #tpu.core_type<tc>, window_params = [{transform_indices = @transform_0, window_bounds = array<i64: 1, 8, 512>}, {pipeline_mode = #tpu.pipeline_mode<synchronous>, transform_indices = @transform_1, window_bounds = array<i64: 8, 80>}, {pipeline_mode = #tpu.pipeline_mode<synchronous>, transform_indices = @transform_2, window_bounds = array<i64: 8, 80>}, {transform_indices = @transform_3, window_bounds = array<i64: 1, 8, 512>}]} {
    %0 = tpu.iota {dimensions = array<i32: 1>} : vector<1x512xi32>
    %c15_i32 = arith.constant 15 : i32
    %1 = vector.broadcast %c15_i32 : i32 to vector<1x512xi32>
    %2 = arith.andi %0, %1 : vector<1x512xi32>
    %c4_i32 = arith.constant 4 : i32
    %3 = vector.broadcast %c4_i32 : i32 to vector<1x512xi32>
    %4 = arith.shrsi %0, %3 : vector<1x512xi32>
    %c15_i32_0 = arith.constant 15 : i32
    %5 = vector.broadcast %c15_i32_0 : i32 to vector<1x512xi32>
    %6 = arith.andi %4, %5 : vector<1x512xi32>
    %c1_i32 = arith.constant 1 : i32
    %7 = vector.broadcast %c1_i32 : i32 to vector<1x512xi32>
    %8 = arith.cmpi sge, %6, %7 : vector<1x512xi32>
    %c14_i32 = arith.constant 14 : i32
    %9 = vector.broadcast %c14_i32 : i32 to vector<1x512xi32>
    %10 = arith.cmpi sle, %6, %9 : vector<1x512xi32>
    %c1_i32_1 = arith.constant 1 : i32
    %11 = vector.broadcast %c1_i32_1 : i32 to vector<1x512xi32>
    %12 = arith.cmpi sge, %2, %11 : vector<1x512xi32>
    %c14_i32_2 = arith.constant 14 : i32
    %13 = vector.broadcast %c14_i32_2 : i32 to vector<1x512xi32>
    %14 = arith.cmpi sle, %2, %13 : vector<1x512xi32>
    %15 = tpu.iota {dimensions = array<i32: 0>} : vector<8x512xi32>
    %c0_i32 = arith.constant 0 : i32
    %16 = vector.broadcast %c0_i32 : i32 to vector<8x512xi32>
    %17 = arith.cmpi eq, %15, %16 : vector<8x512xi32>
    %cst = arith.constant 1.000000e+00 : f32
    %cst_3 = arith.constant 0.000000e+00 : f32
    %18 = vector.broadcast %cst : f32 to vector<8x512xf32>
    %19 = vector.broadcast %cst_3 : f32 to vector<8x512xf32>
    %20 = arith.select %17, %18, %19 : vector<8x512xi1>, vector<8x512xf32>
    %c72 = arith.constant 72 : index
    %c0 = arith.constant 0 : index
    %21 = vector.load %arg6[%c72, %c0] : memref<80x512xf32, #tpu.memory_space<vmem>>, vector<8x512xf32>
    tpu.vector_store %arg6[%c72, %c0], %20 {strides = array<i32>} : memref<80x512xf32, #tpu.memory_space<vmem>>, vector<8x512xf32>,
    %c0_4 = arith.constant 0 : index
    %c0_5 = arith.constant 0 : index
    %c0_6 = arith.constant 0 : index
    %22 = vector.load %arg1[%c0_4, %c0_5, %c0_6] : memref<1x8x512xf32, #tpu.memory_space<vmem>>, vector<1x8x512xf32>
    %23 = vector.shape_cast %22 : vector<1x8x512xf32> to vector<8x512xf32>
    %c0_7 = arith.constant 0 : index
    %c128 = arith.constant 128 : index
    %24 = vector.load %arg5[%c0_7, %c128] : memref<8x768xf32, #tpu.memory_space<vmem>>, vector<8x512xf32>
    tpu.vector_store %arg5[%c0_7, %c128], %23 {strides = array<i32>} : memref<8x768xf32, #tpu.memory_space<vmem>>, vector<8x512xf32>,
    %c0_8 = arith.constant 0 : index
    %c111 = arith.constant 111 : index
    %25 = vector.load %arg5[%c0_8, %c111] : memref<8x768xf32, #tpu.memory_space<vmem>>, vector<8x512xf32>
    %26 = arith.andi %8, %12 : vector<1x512xi1>
    %cst_9 = arith.constant 0.000000e+00 : f32
    %27 = vector.shape_cast %26 : vector<1x512xi1> to vector<1x512xi1>
    %28 = vector.broadcast %27 : vector<1x512xi1> to vector<8x512xi1>
    %29 = vector.broadcast %cst_9 : f32 to vector<8x512xf32>
    %30 = arith.select %28, %25, %29 : vector<8x512xi1>, vector<8x512xf32>
    %c0_10 = arith.constant 0 : index
    %c0_11 = arith.constant 0 : index
    %31 = vector.load %arg6[%c0_10, %c0_11] : memref<80x512xf32, #tpu.memory_space<vmem>>, vector<8x512xf32>
    tpu.vector_store %arg6[%c0_10, %c0_11], %30 {strides = array<i32>} : memref<80x512xf32, #tpu.memory_space<vmem>>, vector<8x512xf32>,
    %c0_12 = arith.constant 0 : index
    %c112 = arith.constant 112 : index
    %32 = vector.load %arg5[%c0_12, %c112] : memref<8x768xf32, #tpu.memory_space<vmem>>, vector<8x512xf32>
    %cst_13 = arith.constant 0.000000e+00 : f32
    %33 = vector.shape_cast %8 : vector<1x512xi1> to vector<1x512xi1>
    %34 = vector.broadcast %33 : vector<1x512xi1> to vector<8x512xi1>
    %35 = vector.broadcast %cst_13 : f32 to vector<8x512xf32>
    %36 = arith.select %34, %32, %35 : vector<8x512xi1>, vector<8x512xf32>
    %c8 = arith.constant 8 : index
    %c0_14 = arith.constant 0 : index
    %37 = vector.load %arg6[%c8, %c0_14] : memref<80x512xf32, #tpu.memory_space<vmem>>, vector<8x512xf32>
    tpu.vector_store %arg6[%c8, %c0_14], %36 {strides = array<i32>} : memref<80x512xf32, #tpu.memory_space<vmem>>, vector<8x512xf32>,
    %c0_15 = arith.constant 0 : index
    %c113 = arith.constant 113 : index
    %38 = vector.load %arg5[%c0_15, %c113] : memref<8x768xf32, #tpu.memory_space<vmem>>, vector<8x512xf32>
    %39 = arith.andi %8, %14 : vector<1x512xi1>
    %cst_16 = arith.constant 0.000000e+00 : f32
    %40 = vector.shape_cast %39 : vector<1x512xi1> to vector<1x512xi1>
    %41 = vector.broadcast %40 : vector<1x512xi1> to vector<8x512xi1>
    %42 = vector.broadcast %cst_16 : f32 to vector<8x512xf32>
    %43 = arith.select %41, %38, %42 : vector<8x512xi1>, vector<8x512xf32>
    %c16 = arith.constant 16 : index
    %c0_17 = arith.constant 0 : index
    %44 = vector.load %arg6[%c16, %c0_17] : memref<80x512xf32, #tpu.memory_space<vmem>>, vector<8x512xf32>
    tpu.vector_store %arg6[%c16, %c0_17], %43 {strides = array<i32>} : memref<80x512xf32, #tpu.memory_space<vmem>>, vector<8x512xf32>,
    %c0_18 = arith.constant 0 : index
    %c127 = arith.constant 127 : index
    %45 = vector.load %arg5[%c0_18, %c127] : memref<8x768xf32, #tpu.memory_space<vmem>>, vector<8x512xf32>
    %cst_19 = arith.constant 0.000000e+00 : f32
    %46 = vector.shape_cast %12 : vector<1x512xi1> to vector<1x512xi1>
    %47 = vector.broadcast %46 : vector<1x512xi1> to vector<8x512xi1>
    %48 = vector.broadcast %cst_19 : f32 to vector<8x512xf32>
    %49 = arith.select %47, %45, %48 : vector<8x512xi1>, vector<8x512xf32>
    %c24 = arith.constant 24 : index
    %c0_20 = arith.constant 0 : index
    %50 = vector.load %arg6[%c24, %c0_20] : memref<80x512xf32, #tpu.memory_space<vmem>>, vector<8x512xf32>
    tpu.vector_store %arg6[%c24, %c0_20], %49 {strides = array<i32>} : memref<80x512xf32, #tpu.memory_space<vmem>>, vector<8x512xf32>,
    %c32 = arith.constant 32 : index
    %c0_21 = arith.constant 0 : index
    %51 = vector.load %arg6[%c32, %c0_21] : memref<80x512xf32, #tpu.memory_space<vmem>>, vector<8x512xf32>
    tpu.vector_store %arg6[%c32, %c0_21], %23 {strides = array<i32>} : memref<80x512xf32, #tpu.memory_space<vmem>>, vector<8x512xf32>,
    %c0_22 = arith.constant 0 : index
    %c129 = arith.constant 129 : index
    %52 = vector.load %arg5[%c0_22, %c129] : memref<8x768xf32, #tpu.memory_space<vmem>>, vector<8x512xf32>
    %cst_23 = arith.constant 0.000000e+00 : f32
    %53 = vector.shape_cast %14 : vector<1x512xi1> to vector<1x512xi1>
    %54 = vector.broadcast %53 : vector<1x512xi1> to vector<8x512xi1>
    %55 = vector.broadcast %cst_23 : f32 to vector<8x512xf32>
    %56 = arith.select %54, %52, %55 : vector<8x512xi1>, vector<8x512xf32>
    %c40 = arith.constant 40 : index
    %c0_24 = arith.constant 0 : index
    %57 = vector.load %arg6[%c40, %c0_24] : memref<80x512xf32, #tpu.memory_space<vmem>>, vector<8x512xf32>
    tpu.vector_store %arg6[%c40, %c0_24], %56 {strides = array<i32>} : memref<80x512xf32, #tpu.memory_space<vmem>>, vector<8x512xf32>,
    %c0_25 = arith.constant 0 : index
    %c143 = arith.constant 143 : index
    %58 = vector.load %arg5[%c0_25, %c143] : memref<8x768xf32, #tpu.memory_space<vmem>>, vector<8x512xf32>
    %59 = arith.andi %10, %12 : vector<1x512xi1>
    %cst_26 = arith.constant 0.000000e+00 : f32
    %60 = vector.shape_cast %59 : vector<1x512xi1> to vector<1x512xi1>
    %61 = vector.broadcast %60 : vector<1x512xi1> to vector<8x512xi1>
    %62 = vector.broadcast %cst_26 : f32 to vector<8x512xf32>
    %63 = arith.select %61, %58, %62 : vector<8x512xi1>, vector<8x512xf32>
    %c48 = arith.constant 48 : index
    %c0_27 = arith.constant 0 : index
    %64 = vector.load %arg6[%c48, %c0_27] : memref<80x512xf32, #tpu.memory_space<vmem>>, vector<8x512xf32>
    tpu.vector_store %arg6[%c48, %c0_27], %63 {strides = array<i32>} : memref<80x512xf32, #tpu.memory_space<vmem>>, vector<8x512xf32>,
    %c0_28 = arith.constant 0 : index
    %c144 = arith.constant 144 : index
    %65 = vector.load %arg5[%c0_28, %c144] : memref<8x768xf32, #tpu.memory_space<vmem>>, vector<8x512xf32>
    %cst_29 = arith.constant 0.000000e+00 : f32
    %66 = vector.shape_cast %10 : vector<1x512xi1> to vector<1x512xi1>
    %67 = vector.broadcast %66 : vector<1x512xi1> to vector<8x512xi1>
    %68 = vector.broadcast %cst_29 : f32 to vector<8x512xf32>
    %69 = arith.select %67, %65, %68 : vector<8x512xi1>, vector<8x512xf32>
    %c56 = arith.constant 56 : index
    %c0_30 = arith.constant 0 : index
    %70 = vector.load %arg6[%c56, %c0_30] : memref<80x512xf32, #tpu.memory_space<vmem>>, vector<8x512xf32>
    tpu.vector_store %arg6[%c56, %c0_30], %69 {strides = array<i32>} : memref<80x512xf32, #tpu.memory_space<vmem>>, vector<8x512xf32>,
    %c0_31 = arith.constant 0 : index
    %c145 = arith.constant 145 : index
    %71 = vector.load %arg5[%c0_31, %c145] : memref<8x768xf32, #tpu.memory_space<vmem>>, vector<8x512xf32>
    %72 = arith.andi %10, %14 : vector<1x512xi1>
    %cst_32 = arith.constant 0.000000e+00 : f32
    %73 = vector.shape_cast %72 : vector<1x512xi1> to vector<1x512xi1>
    %74 = vector.broadcast %73 : vector<1x512xi1> to vector<8x512xi1>
    %75 = vector.broadcast %cst_32 : f32 to vector<8x512xf32>
    %76 = arith.select %74, %71, %75 : vector<8x512xi1>, vector<8x512xf32>
    %c64 = arith.constant 64 : index
    %c0_33 = arith.constant 0 : index
    %77 = vector.load %arg6[%c64, %c0_33] : memref<80x512xf32, #tpu.memory_space<vmem>>, vector<8x512xf32>
    tpu.vector_store %arg6[%c64, %c0_33], %76 {strides = array<i32>} : memref<80x512xf32, #tpu.memory_space<vmem>>, vector<8x512xf32>,
    %c0_34 = arith.constant 0 : index
    %c0_35 = arith.constant 0 : index
    %78 = vector.load %arg2[%c0_34, %c0_35] : memref<8x80xf32, #tpu.memory_space<vmem>>, vector<8x80xf32>
    %c0_36 = arith.constant 0 : index
    %c0_37 = arith.constant 0 : index
    %79 = vector.load %arg6[%c0_36, %c0_37] : memref<80x512xf32, #tpu.memory_space<vmem>>, vector<80x512xf32>
    %cst_38 = arith.constant dense<0.000000e+00> : vector<8x512xf32>
    %80 = tpu.matmul %78, %79, %cst_38 {dimension_numbers = #tpu.dot_dimension_numbers<[1], [0], [0], [1], [0, 0, 1, 1], [], []>} : vector<8x80xf32>, vector<80x512xf32>, vector<8x512xf32> -> vector<8x512xf32>
    %cst_39 = arith.constant 0.000000e+00 : f32
    %81 = vector.broadcast %cst_39 : f32 to vector<8x512xf32>
    %82 = arith.maximumf %80, %81 : vector<8x512xf32>
    %c0_40 = arith.constant 0 : index
    %c128_41 = arith.constant 128 : index
    %83 = vector.load %arg5[%c0_40, %c128_41] : memref<8x768xf32, #tpu.memory_space<vmem>>, vector<8x512xf32>
    tpu.vector_store %arg5[%c0_40, %c128_41], %82 {strides = array<i32>} : memref<8x768xf32, #tpu.memory_space<vmem>>, vector<8x512xf32>,
    %c0_42 = arith.constant 0 : index
    %c111_43 = arith.constant 111 : index
    %84 = vector.load %arg5[%c0_42, %c111_43] : memref<8x768xf32, #tpu.memory_space<vmem>>, vector<8x512xf32>
    %85 = arith.andi %8, %12 : vector<1x512xi1>
    %cst_44 = arith.constant 0.000000e+00 : f32
    %86 = vector.shape_cast %85 : vector<1x512xi1> to vector<1x512xi1>
    %87 = vector.broadcast %86 : vector<1x512xi1> to vector<8x512xi1>
    %88 = vector.broadcast %cst_44 : f32 to vector<8x512xf32>
    %89 = arith.select %87, %84, %88 : vector<8x512xi1>, vector<8x512xf32>
    %c0_45 = arith.constant 0 : index
    %c0_46 = arith.constant 0 : index
    %90 = vector.load %arg6[%c0_45, %c0_46] : memref<80x512xf32, #tpu.memory_space<vmem>>, vector<8x512xf32>
    tpu.vector_store %arg6[%c0_45, %c0_46], %89 {strides = array<i32>} : memref<80x512xf32, #tpu.memory_space<vmem>>, vector<8x512xf32>,
    %c0_47 = arith.constant 0 : index
    %c112_48 = arith.constant 112 : index
    %91 = vector.load %arg5[%c0_47, %c112_48] : memref<8x768xf32, #tpu.memory_space<vmem>>, vector<8x512xf32>
    %cst_49 = arith.constant 0.000000e+00 : f32
    %92 = vector.shape_cast %8 : vector<1x512xi1> to vector<1x512xi1>
    %93 = vector.broadcast %92 : vector<1x512xi1> to vector<8x512xi1>
    %94 = vector.broadcast %cst_49 : f32 to vector<8x512xf32>
    %95 = arith.select %93, %91, %94 : vector<8x512xi1>, vector<8x512xf32>
    %c8_50 = arith.constant 8 : index
    %c0_51 = arith.constant 0 : index
    %96 = vector.load %arg6[%c8_50, %c0_51] : memref<80x512xf32, #tpu.memory_space<vmem>>, vector<8x512xf32>
    tpu.vector_store %arg6[%c8_50, %c0_51], %95 {strides = array<i32>} : memref<80x512xf32, #tpu.memory_space<vmem>>, vector<8x512xf32>,
    %c0_52 = arith.constant 0 : index
    %c113_53 = arith.constant 113 : index
    %97 = vector.load %arg5[%c0_52, %c113_53] : memref<8x768xf32, #tpu.memory_space<vmem>>, vector<8x512xf32>
    %98 = arith.andi %8, %14 : vector<1x512xi1>
    %cst_54 = arith.constant 0.000000e+00 : f32
    %99 = vector.shape_cast %98 : vector<1x512xi1> to vector<1x512xi1>
    %100 = vector.broadcast %99 : vector<1x512xi1> to vector<8x512xi1>
    %101 = vector.broadcast %cst_54 : f32 to vector<8x512xf32>
    %102 = arith.select %100, %97, %101 : vector<8x512xi1>, vector<8x512xf32>
    %c16_55 = arith.constant 16 : index
    %c0_56 = arith.constant 0 : index
    %103 = vector.load %arg6[%c16_55, %c0_56] : memref<80x512xf32, #tpu.memory_space<vmem>>, vector<8x512xf32>
    tpu.vector_store %arg6[%c16_55, %c0_56], %102 {strides = array<i32>} : memref<80x512xf32, #tpu.memory_space<vmem>>, vector<8x512xf32>,
    %c0_57 = arith.constant 0 : index
    %c127_58 = arith.constant 127 : index
    %104 = vector.load %arg5[%c0_57, %c127_58] : memref<8x768xf32, #tpu.memory_space<vmem>>, vector<8x512xf32>
    %cst_59 = arith.constant 0.000000e+00 : f32
    %105 = vector.shape_cast %12 : vector<1x512xi1> to vector<1x512xi1>
    %106 = vector.broadcast %105 : vector<1x512xi1> to vector<8x512xi1>
    %107 = vector.broadcast %cst_59 : f32 to vector<8x512xf32>
    %108 = arith.select %106, %104, %107 : vector<8x512xi1>, vector<8x512xf32>
    %c24_60 = arith.constant 24 : index
    %c0_61 = arith.constant 0 : index
    %109 = vector.load %arg6[%c24_60, %c0_61] : memref<80x512xf32, #tpu.memory_space<vmem>>, vector<8x512xf32>
    tpu.vector_store %arg6[%c24_60, %c0_61], %108 {strides = array<i32>} : memref<80x512xf32, #tpu.memory_space<vmem>>, vector<8x512xf32>,
    %c32_62 = arith.constant 32 : index
    %c0_63 = arith.constant 0 : index
    %110 = vector.load %arg6[%c32_62, %c0_63] : memref<80x512xf32, #tpu.memory_space<vmem>>, vector<8x512xf32>
    tpu.vector_store %arg6[%c32_62, %c0_63], %82 {strides = array<i32>} : memref<80x512xf32, #tpu.memory_space<vmem>>, vector<8x512xf32>,
    %c0_64 = arith.constant 0 : index
    %c129_65 = arith.constant 129 : index
    %111 = vector.load %arg5[%c0_64, %c129_65] : memref<8x768xf32, #tpu.memory_space<vmem>>, vector<8x512xf32>
    %cst_66 = arith.constant 0.000000e+00 : f32
    %112 = vector.shape_cast %14 : vector<1x512xi1> to vector<1x512xi1>
    %113 = vector.broadcast %112 : vector<1x512xi1> to vector<8x512xi1>
    %114 = vector.broadcast %cst_66 : f32 to vector<8x512xf32>
    %115 = arith.select %113, %111, %114 : vector<8x512xi1>, vector<8x512xf32>
    %c40_67 = arith.constant 40 : index
    %c0_68 = arith.constant 0 : index
    %116 = vector.load %arg6[%c40_67, %c0_68] : memref<80x512xf32, #tpu.memory_space<vmem>>, vector<8x512xf32>
    tpu.vector_store %arg6[%c40_67, %c0_68], %115 {strides = array<i32>} : memref<80x512xf32, #tpu.memory_space<vmem>>, vector<8x512xf32>,
    %c0_69 = arith.constant 0 : index
    %c143_70 = arith.constant 143 : index
    %117 = vector.load %arg5[%c0_69, %c143_70] : memref<8x768xf32, #tpu.memory_space<vmem>>, vector<8x512xf32>
    %118 = arith.andi %10, %12 : vector<1x512xi1>
    %cst_71 = arith.constant 0.000000e+00 : f32
    %119 = vector.shape_cast %118 : vector<1x512xi1> to vector<1x512xi1>
    %120 = vector.broadcast %119 : vector<1x512xi1> to vector<8x512xi1>
    %121 = vector.broadcast %cst_71 : f32 to vector<8x512xf32>
    %122 = arith.select %120, %117, %121 : vector<8x512xi1>, vector<8x512xf32>
    %c48_72 = arith.constant 48 : index
    %c0_73 = arith.constant 0 : index
    %123 = vector.load %arg6[%c48_72, %c0_73] : memref<80x512xf32, #tpu.memory_space<vmem>>, vector<8x512xf32>
    tpu.vector_store %arg6[%c48_72, %c0_73], %122 {strides = array<i32>} : memref<80x512xf32, #tpu.memory_space<vmem>>, vector<8x512xf32>,
    %c0_74 = arith.constant 0 : index
    %c144_75 = arith.constant 144 : index
    %124 = vector.load %arg5[%c0_74, %c144_75] : memref<8x768xf32, #tpu.memory_space<vmem>>, vector<8x512xf32>
    %cst_76 = arith.constant 0.000000e+00 : f32
    %125 = vector.shape_cast %10 : vector<1x512xi1> to vector<1x512xi1>
    %126 = vector.broadcast %125 : vector<1x512xi1> to vector<8x512xi1>
    %127 = vector.broadcast %cst_76 : f32 to vector<8x512xf32>
    %128 = arith.select %126, %124, %127 : vector<8x512xi1>, vector<8x512xf32>
    %c56_77 = arith.constant 56 : index
    %c0_78 = arith.constant 0 : index
    %129 = vector.load %arg6[%c56_77, %c0_78] : memref<80x512xf32, #tpu.memory_space<vmem>>, vector<8x512xf32>
    tpu.vector_store %arg6[%c56_77, %c0_78], %128 {strides = array<i32>} : memref<80x512xf32, #tpu.memory_space<vmem>>, vector<8x512xf32>,
    %c0_79 = arith.constant 0 : index
    %c145_80 = arith.constant 145 : index
    %130 = vector.load %arg5[%c0_79, %c145_80] : memref<8x768xf32, #tpu.memory_space<vmem>>, vector<8x512xf32>
    %131 = arith.andi %10, %14 : vector<1x512xi1>
    %cst_81 = arith.constant 0.000000e+00 : f32
    %132 = vector.shape_cast %131 : vector<1x512xi1> to vector<1x512xi1>
    %133 = vector.broadcast %132 : vector<1x512xi1> to vector<8x512xi1>
    %134 = vector.broadcast %cst_81 : f32 to vector<8x512xf32>
    %135 = arith.select %133, %130, %134 : vector<8x512xi1>, vector<8x512xf32>
    %c64_82 = arith.constant 64 : index
    %c0_83 = arith.constant 0 : index
    %136 = vector.load %arg6[%c64_82, %c0_83] : memref<80x512xf32, #tpu.memory_space<vmem>>, vector<8x512xf32>
    tpu.vector_store %arg6[%c64_82, %c0_83], %135 {strides = array<i32>} : memref<80x512xf32, #tpu.memory_space<vmem>>, vector<8x512xf32>,
    %c0_84 = arith.constant 0 : index
    %c0_85 = arith.constant 0 : index
    %137 = vector.load %arg3[%c0_84, %c0_85] : memref<8x80xf32, #tpu.memory_space<vmem>>, vector<8x80xf32>
    %c0_86 = arith.constant 0 : index
    %c0_87 = arith.constant 0 : index
    %138 = vector.load %arg6[%c0_86, %c0_87] : memref<80x512xf32, #tpu.memory_space<vmem>>, vector<80x512xf32>
    %cst_88 = arith.constant dense<0.000000e+00> : vector<8x512xf32>
    %139 = tpu.matmul %137, %138, %cst_88 {dimension_numbers = #tpu.dot_dimension_numbers<[1], [0], [0], [1], [0, 0, 1, 1], [], []>} : vector<8x80xf32>, vector<80x512xf32>, vector<8x512xf32> -> vector<8x512xf32>
    %140 = arith.addf %139, %23 : vector<8x512xf32>
    %cst_89 = arith.constant 0.000000e+00 : f32
    %141 = vector.broadcast %cst_89 : f32 to vector<8x512xf32>
    %142 = arith.maximumf %140, %141 : vector<8x512xf32>
    %c0_90 = arith.constant 0 : index
    %c0_91 = arith.constant 0 : index
    %c0_92 = arith.constant 0 : index
    %143 = vector.load %arg4[%c0_90, %c0_91, %c0_92] : memref<1x8x512xf32, #tpu.memory_space<vmem>>, vector<1x8x512xf32>
    %144 = vector.shape_cast %143 : vector<1x8x512xf32> to vector<8x512xf32>
    %145 = vector.shape_cast %142 : vector<8x512xf32> to vector<1x8x512xf32>
    tpu.vector_store %arg4[%c0_90, %c0_91, %c0_92], %145 {strides = array<i32>} : memref<1x8x512xf32, #tpu.memory_space<vmem>>, vector<1x8x512xf32>,
    return
  }
  func.func @transform_0(%arg0: i32) -> (i32, i32, i32) {
    %c0_i32 = arith.constant 0 : i32
    %c0_i32_0 = arith.constant 0 : i32
    %c0_i32_1 = arith.constant 0 : i32
    return %arg0, %c0_i32, %c0_i32_0 : i32, i32, i32
  }
  func.func @transform_1(%arg0: i32) -> (i32, i32) {
    %c0_i32 = arith.constant 0 : i32
    %c0_i32_0 = arith.constant 0 : i32
    %c0_i32_1 = arith.constant 0 : i32
    return %c0_i32, %c0_i32_0 : i32, i32
  }
  func.func @transform_2(%arg0: i32) -> (i32, i32) {
    %c0_i32 = arith.constant 0 : i32
    %c0_i32_0 = arith.constant 0 : i32
    %c0_i32_1 = arith.constant 0 : i32
    return %c0_i32, %c0_i32_0 : i32, i32
  }
  func.func @transform_3(%arg0: i32) -> (i32, i32, i32) {
    %c0_i32 = arith.constant 0 : i32
    %c0_i32_0 = arith.constant 0 : i32
    %c0_i32_1 = arith.constant 0 : i32
    return %arg0, %c0_i32, %c0_i32_0 : i32, i32, i32
  }
}

</mosaic_0001>

<llo_original>
// kernel: tpu_custom_call.1
$region0: #{tpu_custom_call.1}
  #allocation0 [shape = 'u32[]', space=smem, size = 0x4, offset = 0x4, fixed_abs, tag = 'smem constant byte address 0x4 - core index']
  #allocation1 [shape = 'u32[144,128]{1,0:T(1,128)}', space=vmem, size = 0x12000, scoped, tag = 'internal scratch']
  #allocation2 [shape = 'f32[8,768]{1,0:T(8,128)}', space=vmem, size = 0x6000, scoped, tag = 'scratch operand']
  #allocation3 [shape = 'f32[80,512]{1,0:T(8,128)}', space=vmem, size = 0x28000, scoped, tag = 'scratch operand']
  %s0 = inlined_call_operand.hbm [shape: f32[1,8,512], index: 0, kind: input, shape index: {}]
  %s1 = inlined_call_operand.hbm [shape: f32[8,80], index: 1, kind: input, shape index: {}]
  %s2 = inlined_call_operand.hbm [shape: f32[8,80], index: 2, kind: input, shape index: {}]
  %s3 = inlined_call_operand.hbm [shape: f32[1,8,512], index: 3, kind: output, shape index: {}]
  %s4 = sld [smem:[#allocation0]]
  $region34: #{tpu_custom_call.1} parent=0
    _
  %s6 = ssub.s32 1, %s4
  %s7 = scalar_select 0, %s6, %s4
  $region1: #{tpu_custom_call.1} parent=0
    #allocation4 [shape = 'u8[16384]{0}', space=vmem, size = 0x4000, scoped, tag = 'input window, operand 0, single buffered']
    #allocation5 [shape = 's32[1]{0}', space=sflag, size = 0x4, scoped, tag = 'scoped memory for tpu_custom_call.1']
    #allocation6 [shape = 's32[1]{0}', space=sflag, size = 0x4, scoped, tag = 'scoped memory for tpu_custom_call.1']
    #allocation7 [shape = 'u8[4096]{0}', space=vmem, size = 0x1000, scoped, tag = 'input window, operand 1, single buffered']
    #allocation8 [shape = 's32[1]{0}', space=sflag, size = 0x4, scoped, tag = 'scoped memory for tpu_custom_call.1']
    #allocation9 [shape = 'u8[4096]{0}', space=vmem, size = 0x1000, scoped, tag = 'input window, operand 2, single buffered']
    #allocation10 [shape = 'u8[16384]{0}', space=vmem, size = 0x4000, scoped, tag = 'output window, operand 0, single buffered']
    %8 = vsyncpa [#allocation5], 0
    %9 = vsyncpa [#allocation8], 0
    %10 = vsyncpa [#allocation6], 0
    // Predicated region
    $region2: #{tpu_custom_call.1} parent=1 // pred_check
      _
    $region3: #{tpu_custom_call.1} parent=1 // pred_check_branch
      %12 = sbr.rel (0) target = $region5
    $region4: #{tpu_custom_call.1} parent=1 // pred_region
      %s14 = ssub.s32 512, 512
      %15 = vsyncadd [#allocation5], %s14
      %s17 = sshll.u32 [#allocation4], 4
      %s18 = int_to_ptr.vmem [resolvable:$true] %s17
      %20 = dma.hbm_to_vmem [thread:$0]  %s0, 512, %s18, [#allocation5]
    $region5: #{tpu_custom_call.1} parent=1 // pred_fallthru
      _
    // Predicated region
    $region6: #{tpu_custom_call.1} parent=1 // pred_check
      _
    $region7: #{tpu_custom_call.1} parent=1 // pred_check_branch
      %22 = sbr.rel (0) target = $region9
    $region8: #{tpu_custom_call.1} parent=1 // pred_region
      %s24 = ssub.s32 128, 128
      %25 = vsyncadd [#allocation8], %s24
      %s27 = sshll.u32 [#allocation7], 4
      %s28 = int_to_ptr.vmem [resolvable:$true] %s27
      %30 = dma.hbm_to_vmem [thread:$0]  %s1, 128, %s28, [#allocation8]
    $region9: #{tpu_custom_call.1} parent=1 // pred_fallthru
      _
    // Predicated region
    $region10: #{tpu_custom_call.1} parent=1 // pred_check
      _
    $region11: #{tpu_custom_call.1} parent=1 // pred_check_branch
      %32 = sbr.rel (0) target = $region13
    $region12: #{tpu_custom_call.1} parent=1 // pred_region
      %s34 = ssub.s32 128, 128
      %35 = vsyncadd [#allocation8], %s34
      %s37 = sshll.u32 [#allocation9], 4
      %s38 = int_to_ptr.vmem [resolvable:$true] %s37
      %40 = dma.hbm_to_vmem [thread:$0]  %s2, 128, %s38, [#allocation8]
    $region13: #{tpu_custom_call.1} parent=1 // pred_fallthru
      _
    // Predicated region
    $region14: #{tpu_custom_call.1} parent=1 // pred_check
      _
    $region15: #{tpu_custom_call.1} parent=1 // pred_check_branch
      %42 = sbr.rel (0) target = $region17
    $region16: #{tpu_custom_call.1} parent=1 // pred_region
      %43 = dma.done [#allocation5], 512
    $region17: #{tpu_custom_call.1} parent=1 // pred_fallthru
      _
    // Predicated region
    $region18: #{tpu_custom_call.1} parent=1 // pred_check
      _
    $region19: #{tpu_custom_call.1} parent=1 // pred_check_branch
      %45 = sbr.rel (0) target = $region21
    $region20: #{tpu_custom_call.1} parent=1 // pred_region
      %46 = dma.done [#allocation8], 128
    $region21: #{tpu_custom_call.1} parent=1 // pred_fallthru
      _
    // Predicated region
    $region22: #{tpu_custom_call.1} parent=1 // pred_check
      _
    $region23: #{tpu_custom_call.1} parent=1 // pred_check_branch
      %48 = sbr.rel (0) target = $region25
    $region24: #{tpu_custom_call.1} parent=1 // pred_region
      %49 = dma.done [#allocation8], 128
    $region25: #{tpu_custom_call.1} parent=1 // pred_fallthru
      _
    %v50 = vlaneseq
    %v51 = vand.u32 %v50, 127
    %v52 = vadd.s32 %v51, 128
    %v53 = vadd.s32 %v51, 256
    %v54 = vadd.s32 %v51, 384
    %v55 = vand.u32 %v51, 15
    %v56 = vand.u32 %v52, 15
    %v57 = vand.u32 %v53, 15
    %v58 = vand.u32 %v54, 15
    %v59 = vshra.s32 %v51, 4
    %v60 = vshra.s32 %v52, 4
    %v61 = vshra.s32 %v53, 4
    %v62 = vshra.s32 %v54, 4
    %v63 = vand.u32 %v59, 15
    %v64 = vand.u32 %v60, 15
    %v65 = vand.u32 %v61, 15
    %v66 = vand.u32 %v62, 15
    %vm67 = vcmp.ge.s32.totalorder %v63, 1
    %vm68 = vcmp.ge.s32.totalorder %v64, 1
    %vm69 = vcmp.ge.s32.totalorder %v65, 1
    %vm70 = vcmp.ge.s32.totalorder %v66, 1
    %vm71 = vcmp.le.s32.totalorder %v63, 14
    %vm72 = vcmp.le.s32.totalorder %v64, 14
    %vm73 = vcmp.le.s32.totalorder %v65, 14
    %vm74 = vcmp.le.s32.totalorder %v66, 14
    %vm75 = vcmp.ge.s32.totalorder %v55, 1
    %vm76 = vcmp.ge.s32.totalorder %v56, 1
    %vm77 = vcmp.ge.s32.totalorder %v57, 1
    %vm78 = vcmp.ge.s32.totalorder %v58, 1
    %vm79 = vcmp.le.s32.totalorder %v55, 14
    %vm80 = vcmp.le.s32.totalorder %v56, 14
    %vm81 = vcmp.le.s32.totalorder %v57, 14
    %vm82 = vcmp.le.s32.totalorder %v58, 14
    %v83 = vlaneseq
    %v84 = vshrl.u32 %v83, 7
    %vm85 = vcmp.eq.s32.totalorder %v84, 0
    %v86 = vsel %vm85, 1.0, 0.0
    %87 = vst [vmem:[#allocation3 + $0x120] sm:$0xff] %v86
    %88 = vst [vmem:[#allocation3 + $0x128] sm:$0xff] %v86
    %89 = vst [vmem:[#allocation3 + $0x130] sm:$0xff] %v86
    %90 = vst [vmem:[#allocation3 + $0x138] sm:$0xff] %v86
    %v91 = vld [vmem:[#allocation4] sm:$0xff]
    %v92 = vld [vmem:[#allocation4 + $0x8] sm:$0xff]
    %v93 = vld [vmem:[#allocation4 + $0x10] sm:$0xff]
    %v94 = vld [vmem:[#allocation4 + $0x18] sm:$0xff]
    %95 = vst [vmem:[#allocation2 + $0x8] sm:$0xff] %v91
    %96 = vst [vmem:[#allocation2 + $0x10] sm:$0xff] %v92
    %97 = vst [vmem:[#allocation2 + $0x18] sm:$0xff] %v93
    %98 = vst [vmem:[#allocation2 + $0x20] sm:$0xff] %v94
    %v99 = vld [vmem:[#allocation2] sm:$0xff]
    %v100 = vld [vmem:[#allocation2 + $0x8] sm:$0xff]
    %v101 = vld [vmem:[#allocation2 + $0x10] sm:$0xff]
    %v102 = vld [vmem:[#allocation2 + $0x18] sm:$0xff]
    %v103 = vld [vmem:[#allocation2 + $0x20] sm:$0xff]
    %vm104 = vmand %vm67, %vm75
    %vm105 = vmand %vm68, %vm76
    %vm106 = vmand %vm69, %vm77
    %vm107 = vmand %vm70, %vm78
    %v108 = vsel %vm104, 1, 0
    %v109 = vsel %vm105, 1, 0
    %v110 = vsel %vm106, 1, 0
    %v111 = vsel %vm107, 1, 0
    %vm112 = vcmp.eq.s32.totalorder %v108, 1
    %vm113 = vcmp.eq.s32.totalorder %v109, 1
    %vm114 = vcmp.eq.s32.totalorder %v110, 1
    %vm115 = vcmp.eq.s32.totalorder %v111, 1
    %121 = vrot.lane.b32.xlu0 %v99, 17
    %v122 = vpop.permute.xlu0 %121
    %123 = vrot.lane.b32.xlu0 %v100, 17
    %v124 = vpop.permute.xlu0 %123
    %125 = vrot.lane.b32.xlu0 %v101, 17
    %v126 = vpop.permute.xlu0 %125
    %127 = vrot.lane.b32.xlu0 %v102, 17
    %v128 = vpop.permute.xlu0 %127
    %129 = vrot.lane.b32.xlu0 %v103, 17
    %v130 = vpop.permute.xlu0 %129
    %vm131 = vcmask 138240
    %v132 = vsel %vm131, %v122, %v124
    %v133 = vsel %vm131, %v124, %v126
    %v134 = vsel %vm131, %v126, %v128
    %v135 = vsel %vm131, %v128, %v130
    %v140 = vsel %vm112, %v132, 0.0
    %v141 = vsel %vm113, %v133, 0.0
    %v142 = vsel %vm114, %v134, 0.0
    %v143 = vsel %vm115, %v135, 0.0
    %144 = vst [vmem:[#allocation3] sm:$0xff] %v140
    %145 = vst [vmem:[#allocation3 + $0x8] sm:$0xff] %v141
    %146 = vst [vmem:[#allocation3 + $0x10] sm:$0xff] %v142
    %147 = vst [vmem:[#allocation3 + $0x18] sm:$0xff] %v143
    %v148 = vld [vmem:[#allocation2] sm:$0xff]
    %v149 = vld [vmem:[#allocation2 + $0x8] sm:$0xff]
    %v150 = vld [vmem:[#allocation2 + $0x10] sm:$0xff]
    %v151 = vld [vmem:[#allocation2 + $0x18] sm:$0xff]
    %v152 = vld [vmem:[#allocation2 + $0x20] sm:$0xff]
    %v153 = vsel %vm67, 1, 0
    %v154 = vsel %vm68, 1, 0
    %v155 = vsel %vm69, 1, 0
    %v156 = vsel %vm70, 1, 0
    %vm157 = vcmp.eq.s32.totalorder %v153, 1
    %vm158 = vcmp.eq.s32.totalorder %v154, 1
    %vm159 = vcmp.eq.s32.totalorder %v155, 1
    %vm160 = vcmp.eq.s32.totalorder %v156, 1
    %166 = vrot.lane.b32.xlu0 %v148, 16
    %v167 = vpop.permute.xlu0 %166
    %168 = vrot.lane.b32.xlu0 %v149, 16
    %v169 = vpop.permute.xlu0 %168
    %170 = vrot.lane.b32.xlu0 %v150, 16
    %v171 = vpop.permute.xlu0 %170
    %172 = vrot.lane.b32.xlu0 %v151, 16
    %v173 = vpop.permute.xlu0 %172
    %174 = vrot.lane.b32.xlu0 %v152, 16
    %v175 = vpop.permute.xlu0 %174
    %vm176 = vcmask 130048
    %v177 = vsel %vm176, %v167, %v169
    %v178 = vsel %vm176, %v169, %v171
    %v179 = vsel %vm176, %v171, %v173
    %v180 = vsel %vm176, %v173, %v175
    %v185 = vsel %vm157, %v177, 0.0
    %v186 = vsel %vm158, %v178, 0.0
    %v187 = vsel %vm159, %v179, 0.0
    %v188 = vsel %vm160, %v180, 0.0
    %189 = vst [vmem:[#allocation3 + $0x20] sm:$0xff] %v185
    %190 = vst [vmem:[#allocation3 + $0x28] sm:$0xff] %v186
    %191 = vst [vmem:[#allocation3 + $0x30] sm:$0xff] %v187
    %192 = vst [vmem:[#allocation3 + $0x38] sm:$0xff] %v188
    %v193 = vld [vmem:[#allocation2] sm:$0xff]
    %v194 = vld [vmem:[#allocation2 + $0x8] sm:$0xff]
    %v195 = vld [vmem:[#allocation2 + $0x10] sm:$0xff]
    %v196 = vld [vmem:[#allocation2 + $0x18] sm:$0xff]
    %v197 = vld [vmem:[#allocation2 + $0x20] sm:$0xff]
    %vm198 = vmand %vm67, %vm79
    %vm199 = vmand %vm68, %vm80
    %vm200 = vmand %vm69, %vm81
    %vm201 = vmand %vm70, %vm82
    %v202 = vsel %vm198, 1, 0
    %v203 = vsel %vm199, 1, 0
    %v204 = vsel %vm200, 1, 0
    %v205 = vsel %vm201, 1, 0
    %vm206 = vcmp.eq.s32.totalorder %v202, 1
    %vm207 = vcmp.eq.s32.totalorder %v203, 1
    %vm208 = vcmp.eq.s32.totalorder %v204, 1
    %vm209 = vcmp.eq.s32.totalorder %v205, 1
    %215 = vrot.lane.b32.xlu0 %v193, 15
    %v216 = vpop.permute.xlu0 %215
    %217 = vrot.lane.b32.xlu0 %v194, 15
    %v218 = vpop.permute.xlu0 %217
    %219 = vrot.lane.b32.xlu0 %v195, 15
    %v220 = vpop.permute.xlu0 %219
    %221 = vrot.lane.b32.xlu0 %v196, 15
    %v222 = vpop.permute.xlu0 %221
    %223 = vrot.lane.b32.xlu0 %v197, 15
    %v224 = vpop.permute.xlu0 %223
    %vm225 = vcmask 121856
    %v226 = vsel %vm225, %v216, %v218
    %v227 = vsel %vm225, %v218, %v220
    %v228 = vsel %vm225, %v220, %v222
    %v229 = vsel %vm225, %v222, %v224
    %v234 = vsel %vm206, %v226, 0.0
    %v235 = vsel %vm207, %v227, 0.0
    %v236 = vsel %vm208, %v228, 0.0
    %v237 = vsel %vm209, %v229, 0.0
    %238 = vst [vmem:[#allocation3 + $0x40] sm:$0xff] %v234
    %239 = vst [vmem:[#allocation3 + $0x48] sm:$0xff] %v235
    %240 = vst [vmem:[#allocation3 + $0x50] sm:$0xff] %v236
    %241 = vst [vmem:[#allocation3 + $0x58] sm:$0xff] %v237
    %v242 = vld [vmem:[#allocation2] sm:$0xff]
    %v243 = vld [vmem:[#allocation2 + $0x8] sm:$0xff]
    %v244 = vld [vmem:[#allocation2 + $0x10] sm:$0xff]
    %v245 = vld [vmem:[#allocation2 + $0x18] sm:$0xff]
    %v246 = vld [vmem:[#allocation2 + $0x20] sm:$0xff]
    %v247 = vsel %vm75, 1, 0
    %v248 = vsel %vm76, 1, 0
    %v249 = vsel %vm77, 1, 0
    %v250 = vsel %vm78, 1, 0
    %vm251 = vcmp.eq.s32.totalorder %v247, 1
    %vm252 = vcmp.eq.s32.totalorder %v248, 1
    %vm253 = vcmp.eq.s32.totalorder %v249, 1
    %vm254 = vcmp.eq.s32.totalorder %v250, 1
    %260 = vrot.lane.b32.xlu0 %v242, 1
    %v261 = vpop.permute.xlu0 %260
    %262 = vrot.lane.b32.xlu0 %v243, 1
    %v263 = vpop.permute.xlu0 %262
    %264 = vrot.lane.b32.xlu0 %v244, 1
    %v265 = vpop.permute.xlu0 %264
    %266 = vrot.lane.b32.xlu0 %v245, 1
    %v267 = vpop.permute.xlu0 %266
    %268 = vrot.lane.b32.xlu0 %v246, 1
    %v269 = vpop.permute.xlu0 %268
    %vm270 = vcmask 7168
    %v271 = vsel %vm270, %v261, %v263
    %v272 = vsel %vm270, %v263, %v265
    %v273 = vsel %vm270, %v265, %v267
    %v274 = vsel %vm270, %v267, %v269
    %v279 = vsel %vm251, %v271, 0.0
    %v280 = vsel %vm252, %v272, 0.0
    %v281 = vsel %vm253, %v273, 0.0
    %v282 = vsel %vm254, %v274, 0.0
    %283 = vst [vmem:[#allocation3 + $0x60] sm:$0xff] %v279
    %284 = vst [vmem:[#allocation3 + $0x68] sm:$0xff] %v280
    %285 = vst [vmem:[#allocation3 + $0x70] sm:$0xff] %v281
    %286 = vst [vmem:[#allocation3 + $0x78] sm:$0xff] %v282
    %287 = vst [vmem:[#allocation3 + $0x80] sm:$0xff] %v91
    %288 = vst [vmem:[#allocation3 + $0x88] sm:$0xff] %v92
    %289 = vst [vmem:[#allocation3 + $0x90] sm:$0xff] %v93
    %290 = vst [vmem:[#allocation3 + $0x98] sm:$0xff] %v94
    %v291 = vld [vmem:[#allocation2 + $0x8] sm:$0xff]
    %v292 = vld [vmem:[#allocation2 + $0x10] sm:$0xff]
    %v293 = vld [vmem:[#allocation2 + $0x18] sm:$0xff]
    %v294 = vld [vmem:[#allocation2 + $0x20] sm:$0xff]
    %v295 = vld [vmem:[#allocation2 + $0x28] sm:$0xff]
    %v296 = vsel %vm79, 1, 0
    %v297 = vsel %vm80, 1, 0
    %v298 = vsel %vm81, 1, 0
    %v299 = vsel %vm82, 1, 0
    %vm300 = vcmp.eq.s32.totalorder %v296, 1
    %vm301 = vcmp.eq.s32.totalorder %v297, 1
    %vm302 = vcmp.eq.s32.totalorder %v298, 1
    %vm303 = vcmp.eq.s32.totalorder %v299, 1
    %309 = vrot.lane.b32.xlu0 %v291, 127
    %v310 = vpop.permute.xlu0 %309
    %311 = vrot.lane.b32.xlu0 %v292, 127
    %v312 = vpop.permute.xlu0 %311
    %313 = vrot.lane.b32.xlu0 %v293, 127
    %v314 = vpop.permute.xlu0 %313
    %315 = vrot.lane.b32.xlu0 %v294, 127
    %v316 = vpop.permute.xlu0 %315
    %317 = vrot.lane.b32.xlu0 %v295, 127
    %v318 = vpop.permute.xlu0 %317
    %vm319 = vcmask 1039360
    %v320 = vsel %vm319, %v310, %v312
    %v321 = vsel %vm319, %v312, %v314
    %v322 = vsel %vm319, %v314, %v316
    %v323 = vsel %vm319, %v316, %v318
    %v328 = vsel %vm300, %v320, 0.0
    %v329 = vsel %vm301, %v321, 0.0
    %v330 = vsel %vm302, %v322, 0.0
    %v331 = vsel %vm303, %v323, 0.0
    %332 = vst [vmem:[#allocation3 + $0xa0] sm:$0xff] %v328
    %333 = vst [vmem:[#allocation3 + $0xa8] sm:$0xff] %v329
    %334 = vst [vmem:[#allocation3 + $0xb0] sm:$0xff] %v330
    %335 = vst [vmem:[#allocation3 + $0xb8] sm:$0xff] %v331
    %v336 = vld [vmem:[#allocation2 + $0x8] sm:$0xff]
    %v337 = vld [vmem:[#allocation2 + $0x10] sm:$0xff]
    %v338 = vld [vmem:[#allocation2 + $0x18] sm:$0xff]
    %v339 = vld [vmem:[#allocation2 + $0x20] sm:$0xff]
    %v340 = vld [vmem:[#allocation2 + $0x28] sm:$0xff]
    %vm341 = vmand %vm71, %vm75
    %vm342 = vmand %vm72, %vm76
    %vm343 = vmand %vm73, %vm77
    %vm344 = vmand %vm74, %vm78
    %v345 = vsel %vm341, 1, 0
    %v346 = vsel %vm342, 1, 0
    %v347 = vsel %vm343, 1, 0
    %v348 = vsel %vm344, 1, 0
    %vm349 = vcmp.eq.s32.totalorder %v345, 1
    %vm350 = vcmp.eq.s32.totalorder %v346, 1
    %vm351 = vcmp.eq.s32.totalorder %v347, 1
    %vm352 = vcmp.eq.s32.totalorder %v348, 1
    %358 = vrot.lane.b32.xlu0 %v336, 113
    %v359 = vpop.permute.xlu0 %358
    %360 = vrot.lane.b32.xlu0 %v337, 113
    %v361 = vpop.permute.xlu0 %360
    %362 = vrot.lane.b32.xlu0 %v338, 113
    %v363 = vpop.permute.xlu0 %362
    %364 = vrot.lane.b32.xlu0 %v339, 113
    %v365 = vpop.permute.xlu0 %364
    %366 = vrot.lane.b32.xlu0 %v340, 113
    %v367 = vpop.permute.xlu0 %366
    %vm368 = vcmask 924672
    %v369 = vsel %vm368, %v359, %v361
    %v370 = vsel %vm368, %v361, %v363
    %v371 = vsel %vm368, %v363, %v365
    %v372 = vsel %vm368, %v365, %v367
    %v377 = vsel %vm349, %v369, 0.0
    %v378 = vsel %vm350, %v370, 0.0
    %v379 = vsel %vm351, %v371, 0.0
    %v380 = vsel %vm352, %v372, 0.0
    %381 = vst [vmem:[#allocation3 + $0xc0] sm:$0xff] %v377
    %382 = vst [vmem:[#allocation3 + $0xc8] sm:$0xff] %v378
    %383 = vst [vmem:[#allocation3 + $0xd0] sm:$0xff] %v379
    %384 = vst [vmem:[#allocation3 + $0xd8] sm:$0xff] %v380
    %v385 = vld [vmem:[#allocation2 + $0x8] sm:$0xff]
    %v386 = vld [vmem:[#allocation2 + $0x10] sm:$0xff]
    %v387 = vld [vmem:[#allocation2 + $0x18] sm:$0xff]
    %v388 = vld [vmem:[#allocation2 + $0x20] sm:$0xff]
    %v389 = vld [vmem:[#allocation2 + $0x28] sm:$0xff]
    %v390 = vsel %vm71, 1, 0
    %v391 = vsel %vm72, 1, 0
    %v392 = vsel %vm73, 1, 0
    %v393 = vsel %vm74, 1, 0
    %vm394 = vcmp.eq.s32.totalorder %v390, 1
    %vm395 = vcmp.eq.s32.totalorder %v391, 1
    %vm396 = vcmp.eq.s32.totalorder %v392, 1
    %vm397 = vcmp.eq.s32.totalorder %v393, 1
    %403 = vrot.lane.b32.xlu0 %v385, 112
    %v404 = vpop.permute.xlu0 %403
    %405 = vrot.lane.b32.xlu0 %v386, 112
    %v406 = vpop.permute.xlu0 %405
    %407 = vrot.lane.b32.xlu0 %v387, 112
    %v408 = vpop.permute.xlu0 %407
    %409 = vrot.lane.b32.xlu0 %v388, 112
    %v410 = vpop.permute.xlu0 %409
    %411 = vrot.lane.b32.xlu0 %v389, 112
    %v412 = vpop.permute.xlu0 %411
    %vm413 = vcmask 916480
    %v414 = vsel %vm413, %v404, %v406
    %v415 = vsel %vm413, %v406, %v408
    %v416 = vsel %vm413, %v408, %v410
    %v417 = vsel %vm413, %v410, %v412
    %v422 = vsel %vm394, %v414, 0.0
    %v423 = vsel %vm395, %v415, 0.0
    %v424 = vsel %vm396, %v416, 0.0
    %v425 = vsel %vm397, %v417, 0.0
    %426 = vst [vmem:[#allocation3 + $0xe0] sm:$0xff] %v422
    %427 = vst [vmem:[#allocation3 + $0xe8] sm:$0xff] %v423
    %428 = vst [vmem:[#allocation3 + $0xf0] sm:$0xff] %v424
    %429 = vst [vmem:[#allocation3 + $0xf8] sm:$0xff] %v425
    %v430 = vld [vmem:[#allocation2 + $0x8] sm:$0xff]
    %v431 = vld [vmem:[#allocation2 + $0x10] sm:$0xff]
    %v432 = vld [vmem:[#allocation2 + $0x18] sm:$0xff]
    %v433 = vld [vmem:[#allocation2 + $0x20] sm:$0xff]
    %v434 = vld [vmem:[#allocation2 + $0x28] sm:$0xff]
    %vm435 = vmand %vm71, %vm79
    %vm436 = vmand %vm72, %vm80
    %vm437 = vmand %vm73, %vm81
    %vm438 = vmand %vm74, %vm82
    %v439 = vsel %vm435, 1, 0
    %v440 = vsel %vm436, 1, 0
    %v441 = vsel %vm437, 1, 0
    %v442 = vsel %vm438, 1, 0
    %vm443 = vcmp.eq.s32.totalorder %v439, 1
    %vm444 = vcmp.eq.s32.totalorder %v440, 1
    %vm445 = vcmp.eq.s32.totalorder %v441, 1
    %vm446 = vcmp.eq.s32.totalorder %v442, 1
    %452 = vrot.lane.b32.xlu0 %v430, 111
    %v453 = vpop.permute.xlu0 %452
    %454 = vrot.lane.b32.xlu0 %v431, 111
    %v455 = vpop.permute.xlu0 %454
    %456 = vrot.lane.b32.xlu0 %v432, 111
    %v457 = vpop.permute.xlu0 %456
    %458 = vrot.lane.b32.xlu0 %v433, 111
    %v459 = vpop.permute.xlu0 %458
    %460 = vrot.lane.b32.xlu0 %v434, 111
    %v461 = vpop.permute.xlu0 %460
    %vm462 = vcmask 908288
    %v463 = vsel %vm462, %v453, %v455
    %v464 = vsel %vm462, %v455, %v457
    %v465 = vsel %vm462, %v457, %v459
    %v466 = vsel %vm462, %v459, %v461
    %v471 = vsel %vm443, %v463, 0.0
    %v472 = vsel %vm444, %v464, 0.0
    %v473 = vsel %vm445, %v465, 0.0
    %v474 = vsel %vm446, %v466, 0.0
    %475 = vst [vmem:[#allocation3 + $0x100] sm:$0xff] %v471
    %476 = vst [vmem:[#allocation3 + $0x108] sm:$0xff] %v472
    %477 = vst [vmem:[#allocation3 + $0x110] sm:$0xff] %v473
    %478 = vst [vmem:[#allocation3 + $0x118] sm:$0xff] %v474
    %v479 = vld [vmem:[#allocation7] sm:$0xff]
    %v480 = vld [vmem:[#allocation3] sm:$0xff]
    %v481 = vld [vmem:[#allocation3 + $0x8] sm:$0xff]
    %v482 = vld [vmem:[#allocation3 + $0x10] sm:$0xff]
    %v483 = vld [vmem:[#allocation3 + $0x18] sm:$0xff]
    %v484 = vld [vmem:[#allocation3 + $0x20] sm:$0xff]
    %v485 = vld [vmem:[#allocation3 + $0x28] sm:$0xff]
    %v486 = vld [vmem:[#allocation3 + $0x30] sm:$0xff]
    %v487 = vld [vmem:[#allocation3 + $0x38] sm:$0xff]
    %v488 = vld [vmem:[#allocation3 + $0x40] sm:$0xff]
    %v489 = vld [vmem:[#allocation3 + $0x48] sm:$0xff]
    %v490 = vld [vmem:[#allocation3 + $0x50] sm:$0xff]
    %v491 = vld [vmem:[#allocation3 + $0x58] sm:$0xff]
    %v492 = vld [vmem:[#allocation3 + $0x60] sm:$0xff]
    %v493 = vld [vmem:[#allocation3 + $0x68] sm:$0xff]
    %v494 = vld [vmem:[#allocation3 + $0x70] sm:$0xff]
    %v495 = vld [vmem:[#allocation3 + $0x78] sm:$0xff]
    %v496 = vld [vmem:[#allocation3 + $0x80] sm:$0xff]
    %v497 = vld [vmem:[#allocation3 + $0x88] sm:$0xff]
    %v498 = vld [vmem:[#allocation3 + $0x90] sm:$0xff]
    %v499 = vld [vmem:[#allocation3 + $0x98] sm:$0xff]
    %v500 = vld [vmem:[#allocation3 + $0xa0] sm:$0xff]
    %v501 = vld [vmem:[#allocation3 + $0xa8] sm:$0xff]
    %v502 = vld [vmem:[#allocation3 + $0xb0] sm:$0xff]
    %v503 = vld [vmem:[#allocation3 + $0xb8] sm:$0xff]
    %v504 = vld [vmem:[#allocation3 + $0xc0] sm:$0xff]
    %v505 = vld [vmem:[#allocation3 + $0xc8] sm:$0xff]
    %v506 = vld [vmem:[#allocation3 + $0xd0] sm:$0xff]
    %v507 = vld [vmem:[#allocation3 + $0xd8] sm:$0xff]
    %v508 = vld [vmem:[#allocation3 + $0xe0] sm:$0xff]
    %v509 = vld [vmem:[#allocation3 + $0xe8] sm:$0xff]
    %v510 = vld [vmem:[#allocation3 + $0xf0] sm:$0xff]
    %v511 = vld [vmem:[#allocation3 + $0xf8] sm:$0xff]
    %v512 = vld [vmem:[#allocation3 + $0x100] sm:$0xff]
    %v513 = vld [vmem:[#allocation3 + $0x108] sm:$0xff]
    %v514 = vld [vmem:[#allocation3 + $0x110] sm:$0xff]
    %v515 = vld [vmem:[#allocation3 + $0x118] sm:$0xff]
    %v516 = vld [vmem:[#allocation3 + $0x120] sm:$0xff]
    %v517 = vld [vmem:[#allocation3 + $0x128] sm:$0xff]
    %v518 = vld [vmem:[#allocation3 + $0x130] sm:$0xff]
    %v519 = vld [vmem:[#allocation3 + $0x138] sm:$0xff]
    %vm520 = vcmask 654336
    %v522 = vsel %vm520, %v479, 0
    %524 = vmatprep.subr.mxu0 0.0
    %525 = vmatpush1.msra.mxu0 0.0
    %526 = vmatprep.subr.mxu0 0.0
    %527 = vmatpush1.msra.mxu0 0.0
    %528 = vmatprep.subr.mxu0 0.0
    %529 = vmatpush1.msra.mxu0 0.0
    %530 = vmatprep.subr.mxu0 0.0
    %531 = vmatpush1.msra.mxu0 0.0
    %532 = vmatprep.subr.mxu0 0.0
    %533 = vmatpush1.msra.mxu0 0.0
    %534 = vmatprep.subr.mxu0 0.0
    %535 = vmatpush1.msra.mxu0 0.0
    %536 = vmatprep.subr.mxu0 %v517
    %537 = vmatpush1.msra.mxu0 %v516
    %538 = vmatprep.subr.mxu0 %v513
    %539 = vmatpush1.msra.mxu0 %v512
    %540 = vmatprep.subr.mxu0 %v509
    %541 = vmatpush1.msra.mxu0 %v508
    %542 = vmatprep.subr.mxu0 %v505
    %543 = vmatpush1.msra.mxu0 %v504
    %544 = vmatprep.subr.mxu0 %v501
    %545 = vmatpush1.msra.mxu0 %v500
    %546 = vmatprep.subr.mxu0 %v497
    %547 = vmatpush1.msra.mxu0 %v496
    %548 = vmatprep.subr.mxu0 %v493
    %549 = vmatpush1.msra.mxu0 %v492
    %550 = vmatprep.subr.mxu0 %v489
    %551 = vmatpush1.msra.mxu0 %v488
    %552 = vmatprep.subr.mxu0 %v485
    %553 = vmatpush1.msra.mxu0 %v484
    %554 = vmatprep.subr.mxu0 %v481
    %555 = vmatpush1.msra.mxu0 %v480
    %556 = vmatprep.subr.mxu0 0.0
    %557 = vmatpush2.msra.mxu0 0.0
    %558 = vmatprep.subr.mxu0 0.0
    %559 = vmatpush2.msra.mxu0 0.0
    %560 = vmatprep.subr.mxu0 0.0
    %561 = vmatpush2.msra.mxu0 0.0
    %562 = vmatprep.subr.mxu0 0.0
    %563 = vmatpush2.msra.mxu0 0.0
    %564 = vmatprep.subr.mxu0 0.0
    %565 = vmatpush2.msra.mxu0 0.0
    %566 = vmatprep.subr.mxu0 0.0
    %567 = vmatpush2.msra.mxu0 0.0
    %568 = vmatprep.subr.mxu0 0.0
    %569 = vmatpush2.msra.mxu0 0.0
    %570 = vmatprep.subr.mxu0 0.0
    %571 = vmatpush2.msra.mxu0 0.0
    %572 = vmatprep.subr.mxu0 0.0
    %573 = vmatpush2.msra.mxu0 0.0
    %574 = vmatprep.subr.mxu0 0.0
    %575 = vmatpush2.msra.mxu0 0.0
    %576 = vmatprep.subr.mxu0 0.0
    %577 = vmatpush2.msra.mxu0 0.0
    %578 = vmatprep.subr.mxu0 0.0
    %579 = vmatpush2.msra.mxu0 0.0
    %580 = vmatprep.subr.mxu0 0.0
    %581 = vmatpush2.msra.mxu0 0.0
    %582 = vmatprep.subr.mxu0 0.0
    %583 = vmatpush2.msra.mxu0 0.0
    %584 = vmatprep.subr.mxu0 0.0
    %585 = vmatpush2.msra.mxu0 0.0
    %586 = vmatprep.subr.mxu0 0.0
    %587 = vmatpush2.msra.mxu0 0.0
    %588 = vmatprep.mubr.f32.mxu0 0.0
    %589 = vmatmul.mubr.f32.gmra.mxu0 %v522
    %v590 = vpop.f32.mrf.mxu0
    %v591 = vadd.f32 0.0, %v590
    %v592 = vpop.f32.mrf.mxu0
    %v593 = vadd.f32 0.0, %v592
    %594 = vdwg.mxu0
    %595 = vmatprep.subr.mxu0 0.0
    %596 = vmatpush1.msra.mxu0 0.0
    %597 = vmatprep.subr.mxu0 0.0
    %598 = vmatpush1.msra.mxu0 0.0
    %599 = vmatprep.subr.mxu0 0.0
    %600 = vmatpush1.msra.mxu0 0.0
    %601 = vmatprep.subr.mxu0 0.0
    %602 = vmatpush1.msra.mxu0 0.0
    %603 = vmatprep.subr.mxu0 0.0
    %604 = vmatpush1.msra.mxu0 0.0
    %605 = vmatprep.subr.mxu0 0.0
    %606 = vmatpush1.msra.mxu0 0.0
    %607 = vmatprep.subr.mxu0 %v519
    %608 = vmatpush1.msra.mxu0 %v518
    %609 = vmatprep.subr.mxu0 %v515
    %610 = vmatpush1.msra.mxu0 %v514
    %611 = vmatprep.subr.mxu0 %v511
    %612 = vmatpush1.msra.mxu0 %v510
    %613 = vmatprep.subr.mxu0 %v507
    %614 = vmatpush1.msra.mxu0 %v506
    %615 = vmatprep.subr.mxu0 %v503
    %616 = vmatpush1.msra.mxu0 %v502
    %617 = vmatprep.subr.mxu0 %v499
    %618 = vmatpush1.msra.mxu0 %v498
    %619 = vmatprep.subr.mxu0 %v495
    %620 = vmatpush1.msra.mxu0 %v494
    %621 = vmatprep.subr.mxu0 %v491
    %622 = vmatpush1.msra.mxu0 %v490
    %623 = vmatprep.subr.mxu0 %v487
    %624 = vmatpush1.msra.mxu0 %v486
    %625 = vmatprep.subr.mxu0 %v483
    %626 = vmatpush1.msra.mxu0 %v482
    %627 = vmatprep.subr.mxu0 0.0
    %628 = vmatpush2.msra.mxu0 0.0
    %629 = vmatprep.subr.mxu0 0.0
    %630 = vmatpush2.msra.mxu0 0.0
    %631 = vmatprep.subr.mxu0 0.0
    %632 = vmatpush2.msra.mxu0 0.0
    %633 = vmatprep.subr.mxu0 0.0
    %634 = vmatpush2.msra.mxu0 0.0
    %635 = vmatprep.subr.mxu0 0.0
    %636 = vmatpush2.msra.mxu0 0.0
    %637 = vmatprep.subr.mxu0 0.0
    %638 = vmatpush2.msra.mxu0 0.0
    %639 = vmatprep.subr.mxu0 0.0
    %640 = vmatpush2.msra.mxu0 0.0
    %641 = vmatprep.subr.mxu0 0.0
    %642 = vmatpush2.msra.mxu0 0.0
    %643 = vmatprep.subr.mxu0 0.0
    %644 = vmatpush2.msra.mxu0 0.0
    %645 = vmatprep.subr.mxu0 0.0
    %646 = vmatpush2.msra.mxu0 0.0
    %647 = vmatprep.subr.mxu0 0.0
    %648 = vmatpush2.msra.mxu0 0.0
    %649 = vmatprep.subr.mxu0 0.0
    %650 = vmatpush2.msra.mxu0 0.0
    %651 = vmatprep.subr.mxu0 0.0
    %652 = vmatpush2.msra.mxu0 0.0
    %653 = vmatprep.subr.mxu0 0.0
    %654 = vmatpush2.msra.mxu0 0.0
    %655 = vmatprep.subr.mxu0 0.0
    %656 = vmatpush2.msra.mxu0 0.0
    %657 = vmatprep.subr.mxu0 0.0
    %658 = vmatpush2.msra.mxu0 0.0
    %659 = vmatprep.mubr.f32.mxu0 0.0
    %660 = vmatmul.mubr.f32.gmra.mxu0 %v522
    %v661 = vpop.f32.mrf.mxu0
    %v662 = vadd.f32 0.0, %v661
    %v663 = vpop.f32.mrf.mxu0
    %v664 = vadd.f32 0.0, %v663
    %665 = vdwg.mxu0
    %v666 = vmax.f32 %v591, 0.0
    %v667 = vmax.f32 %v593, 0.0
    %v668 = vmax.f32 %v662, 0.0
    %v669 = vmax.f32 %v664, 0.0
    %670 = vst [vmem:[#allocation2 + $0x8] sm:$0xff] %v666
    %671 = vst [vmem:[#allocation2 + $0x10] sm:$0xff] %v667
    %672 = vst [vmem:[#allocation2 + $0x18] sm:$0xff] %v668
    %673 = vst [vmem:[#allocation2 + $0x20] sm:$0xff] %v669
    %v674 = vld [vmem:[#allocation2] sm:$0xff]
    %v675 = vld [vmem:[#allocation2 + $0x8] sm:$0xff]
    %v676 = vld [vmem:[#allocation2 + $0x10] sm:$0xff]
    %v677 = vld [vmem:[#allocation2 + $0x18] sm:$0xff]
    %v678 = vld [vmem:[#allocation2 + $0x20] sm:$0xff]
    %684 = vrot.lane.b32.xlu0 %v674, 17
    %v685 = vpop.permute.xlu0 %684
    %686 = vrot.lane.b32.xlu0 %v675, 17
    %v687 = vpop.permute.xlu0 %686
    %688 = vrot.lane.b32.xlu0 %v676, 17
    %v689 = vpop.permute.xlu0 %688
    %690 = vrot.lane.b32.xlu0 %v677, 17
    %v691 = vpop.permute.xlu0 %690
    %692 = vrot.lane.b32.xlu0 %v678, 17
    %v693 = vpop.permute.xlu0 %692
    %v694 = vsel %vm131, %v685, %v687
    %v695 = vsel %vm131, %v687, %v689
    %v696 = vsel %vm131, %v689, %v691
    %v697 = vsel %vm131, %v691, %v693
    %v702 = vsel %vm112, %v694, 0.0
    %v703 = vsel %vm113, %v695, 0.0
    %v704 = vsel %vm114, %v696, 0.0
    %v705 = vsel %vm115, %v697, 0.0
    %706 = vst [vmem:[#allocation3] sm:$0xff] %v702
    %707 = vst [vmem:[#allocation3 + $0x8] sm:$0xff] %v703
    %708 = vst [vmem:[#allocation3 + $0x10] sm:$0xff] %v704
    %709 = vst [vmem:[#allocation3 + $0x18] sm:$0xff] %v705
    %v710 = vld [vmem:[#allocation2] sm:$0xff]
    %v711 = vld [vmem:[#allocation2 + $0x8] sm:$0xff]
    %v712 = vld [vmem:[#allocation2 + $0x10] sm:$0xff]
    %v713 = vld [vmem:[#allocation2 + $0x18] sm:$0xff]
    %v714 = vld [vmem:[#allocation2 + $0x20] sm:$0xff]
    %720 = vrot.lane.b32.xlu0 %v710, 16
    %v721 = vpop.permute.xlu0 %720
    %722 = vrot.lane.b32.xlu0 %v711, 16
    %v723 = vpop.permute.xlu0 %722
    %724 = vrot.lane.b32.xlu0 %v712, 16
    %v725 = vpop.permute.xlu0 %724
    %726 = vrot.lane.b32.xlu0 %v713, 16
    %v727 = vpop.permute.xlu0 %726
    %728 = vrot.lane.b32.xlu0 %v714, 16
    %v729 = vpop.permute.xlu0 %728
    %v730 = vsel %vm176, %v721, %v723
    %v731 = vsel %vm176, %v723, %v725
    %v732 = vsel %vm176, %v725, %v727
    %v733 = vsel %vm176, %v727, %v729
    %v738 = vsel %vm157, %v730, 0.0
    %v739 = vsel %vm158, %v731, 0.0
    %v740 = vsel %vm159, %v732, 0.0
    %v741 = vsel %vm160, %v733, 0.0
    %742 = vst [vmem:[#allocation3 + $0x20] sm:$0xff] %v738
    %743 = vst [vmem:[#allocation3 + $0x28] sm:$0xff] %v739
    %744 = vst [vmem:[#allocation3 + $0x30] sm:$0xff] %v740
    %745 = vst [vmem:[#allocation3 + $0x38] sm:$0xff] %v741
    %v746 = vld [vmem:[#allocation2] sm:$0xff]
    %v747 = vld [vmem:[#allocation2 + $0x8] sm:$0xff]
    %v748 = vld [vmem:[#allocation2 + $0x10] sm:$0xff]
    %v749 = vld [vmem:[#allocation2 + $0x18] sm:$0xff]
    %v750 = vld [vmem:[#allocation2 + $0x20] sm:$0xff]
    %756 = vrot.lane.b32.xlu0 %v746, 15
    %v757 = vpop.permute.xlu0 %756
    %758 = vrot.lane.b32.xlu0 %v747, 15
    %v759 = vpop.permute.xlu0 %758
    %760 = vrot.lane.b32.xlu0 %v748, 15
    %v761 = vpop.permute.xlu0 %760
    %762 = vrot.lane.b32.xlu0 %v749, 15
    %v763 = vpop.permute.xlu0 %762
    %764 = vrot.lane.b32.xlu0 %v750, 15
    %v765 = vpop.permute.xlu0 %764
    %v766 = vsel %vm225, %v757, %v759
    %v767 = vsel %vm225, %v759, %v761
    %v768 = vsel %vm225, %v761, %v763
    %v769 = vsel %vm225, %v763, %v765
    %v774 = vsel %vm206, %v766, 0.0
    %v775 = vsel %vm207, %v767, 0.0
    %v776 = vsel %vm208, %v768, 0.0
    %v777 = vsel %vm209, %v769, 0.0
    %778 = vst [vmem:[#allocation3 + $0x40] sm:$0xff] %v774
    %779 = vst [vmem:[#allocation3 + $0x48] sm:$0xff] %v775
    %780 = vst [vmem:[#allocation3 + $0x50] sm:$0xff] %v776
    %781 = vst [vmem:[#allocation3 + $0x58] sm:$0xff] %v777
    %v782 = vld [vmem:[#allocation2] sm:$0xff]
    %v783 = vld [vmem:[#allocation2 + $0x8] sm:$0xff]
    %v784 = vld [vmem:[#allocation2 + $0x10] sm:$0xff]
    %v785 = vld [vmem:[#allocation2 + $0x18] sm:$0xff]
    %v786 = vld [vmem:[#allocation2 + $0x20] sm:$0xff]
    %792 = vrot.lane.b32.xlu0 %v782, 1
    %v793 = vpop.permute.xlu0 %792
    %794 = vrot.lane.b32.xlu0 %v783, 1
    %v795 = vpop.permute.xlu0 %794
    %796 = vrot.lane.b32.xlu0 %v784, 1
    %v797 = vpop.permute.xlu0 %796
    %798 = vrot.lane.b32.xlu0 %v785, 1
    %v799 = vpop.permute.xlu0 %798
    %800 = vrot.lane.b32.xlu0 %v786, 1
    %v801 = vpop.permute.xlu0 %800
    %v802 = vsel %vm270, %v793, %v795
    %v803 = vsel %vm270, %v795, %v797
    %v804 = vsel %vm270, %v797, %v799
    %v805 = vsel %vm270, %v799, %v801
    %v810 = vsel %vm251, %v802, 0.0
    %v811 = vsel %vm252, %v803, 0.0
    %v812 = vsel %vm253, %v804, 0.0
    %v813 = vsel %vm254, %v805, 0.0
    %814 = vst [vmem:[#allocation3 + $0x60] sm:$0xff] %v810
    %815 = vst [vmem:[#allocation3 + $0x68] sm:$0xff] %v811
    %816 = vst [vmem:[#allocation3 + $0x70] sm:$0xff] %v812
    %817 = vst [vmem:[#allocation3 + $0x78] sm:$0xff] %v813
    %818 = vst [vmem:[#allocation3 + $0x80] sm:$0xff] %v666
    %819 = vst [vmem:[#allocation3 + $0x88] sm:$0xff] %v667
    %820 = vst [vmem:[#allocation3 + $0x90] sm:$0xff] %v668
    %821 = vst [vmem:[#allocation3 + $0x98] sm:$0xff] %v669
    %v822 = vld [vmem:[#allocation2 + $0x8] sm:$0xff]
    %v823 = vld [vmem:[#allocation2 + $0x10] sm:$0xff]
    %v824 = vld [vmem:[#allocation2 + $0x18] sm:$0xff]
    %v825 = vld [vmem:[#allocation2 + $0x20] sm:$0xff]
    %v826 = vld [vmem:[#allocation2 + $0x28] sm:$0xff]
    %832 = vrot.lane.b32.xlu0 %v822, 127
    %v833 = vpop.permute.xlu0 %832
    %834 = vrot.lane.b32.xlu0 %v823, 127
    %v835 = vpop.permute.xlu0 %834
    %836 = vrot.lane.b32.xlu0 %v824, 127
    %v837 = vpop.permute.xlu0 %836
    %838 = vrot.lane.b32.xlu0 %v825, 127
    %v839 = vpop.permute.xlu0 %838
    %840 = vrot.lane.b32.xlu0 %v826, 127
    %v841 = vpop.permute.xlu0 %840
    %v842 = vsel %vm319, %v833, %v835
    %v843 = vsel %vm319, %v835, %v837
    %v844 = vsel %vm319, %v837, %v839
    %v845 = vsel %vm319, %v839, %v841
    %v850 = vsel %vm300, %v842, 0.0
    %v851 = vsel %vm301, %v843, 0.0
    %v852 = vsel %vm302, %v844, 0.0
    %v853 = vsel %vm303, %v845, 0.0
    %854 = vst [vmem:[#allocation3 + $0xa0] sm:$0xff] %v850
    %855 = vst [vmem:[#allocation3 + $0xa8] sm:$0xff] %v851
    %856 = vst [vmem:[#allocation3 + $0xb0] sm:$0xff] %v852
    %857 = vst [vmem:[#allocation3 + $0xb8] sm:$0xff] %v853
    %v858 = vld [vmem:[#allocation2 + $0x8] sm:$0xff]
    %v859 = vld [vmem:[#allocation2 + $0x10] sm:$0xff]
    %v860 = vld [vmem:[#allocation2 + $0x18] sm:$0xff]
    %v861 = vld [vmem:[#allocation2 + $0x20] sm:$0xff]
    %v862 = vld [vmem:[#allocation2 + $0x28] sm:$0xff]
    %868 = vrot.lane.b32.xlu0 %v858, 113
    %v869 = vpop.permute.xlu0 %868
    %870 = vrot.lane.b32.xlu0 %v859, 113
    %v871 = vpop.permute.xlu0 %870
    %872 = vrot.lane.b32.xlu0 %v860, 113
    %v873 = vpop.permute.xlu0 %872
    %874 = vrot.lane.b32.xlu0 %v861, 113
    %v875 = vpop.permute.xlu0 %874
    %876 = vrot.lane.b32.xlu0 %v862, 113
    %v877 = vpop.permute.xlu0 %876
    %v878 = vsel %vm368, %v869, %v871
    %v879 = vsel %vm368, %v871, %v873
    %v880 = vsel %vm368, %v873, %v875
    %v881 = vsel %vm368, %v875, %v877
    %v886 = vsel %vm349, %v878, 0.0
    %v887 = vsel %vm350, %v879, 0.0
    %v888 = vsel %vm351, %v880, 0.0
    %v889 = vsel %vm352, %v881, 0.0
    %890 = vst [vmem:[#allocation3 + $0xc0] sm:$0xff] %v886
    %891 = vst [vmem:[#allocation3 + $0xc8] sm:$0xff] %v887
    %892 = vst [vmem:[#allocation3 + $0xd0] sm:$0xff] %v888
    %893 = vst [vmem:[#allocation3 + $0xd8] sm:$0xff] %v889
    %v894 = vld [vmem:[#allocation2 + $0x8] sm:$0xff]
    %v895 = vld [vmem:[#allocation2 + $0x10] sm:$0xff]
    %v896 = vld [vmem:[#allocation2 + $0x18] sm:$0xff]
    %v897 = vld [vmem:[#allocation2 + $0x20] sm:$0xff]
    %v898 = vld [vmem:[#allocation2 + $0x28] sm:$0xff]
    %904 = vrot.lane.b32.xlu0 %v894, 112
    %v905 = vpop.permute.xlu0 %904
    %906 = vrot.lane.b32.xlu0 %v895, 112
    %v907 = vpop.permute.xlu0 %906
    %908 = vrot.lane.b32.xlu0 %v896, 112
    %v909 = vpop.permute.xlu0 %908
    %910 = vrot.lane.b32.xlu0 %v897, 112
    %v911 = vpop.permute.xlu0 %910
    %912 = vrot.lane.b32.xlu0 %v898, 112
    %v913 = vpop.permute.xlu0 %912
    %v914 = vsel %vm413, %v905, %v907
    %v915 = vsel %vm413, %v907, %v909
    %v916 = vsel %vm413, %v909, %v911
    %v917 = vsel %vm413, %v911, %v913
    %v922 = vsel %vm394, %v914, 0.0
    %v923 = vsel %vm395, %v915, 0.0
    %v924 = vsel %vm396, %v916, 0.0
    %v925 = vsel %vm397, %v917, 0.0
    %926 = vst [vmem:[#allocation3 + $0xe0] sm:$0xff] %v922
    %927 = vst [vmem:[#allocation3 + $0xe8] sm:$0xff] %v923
    %928 = vst [vmem:[#allocation3 + $0xf0] sm:$0xff] %v924
    %929 = vst [vmem:[#allocation3 + $0xf8] sm:$0xff] %v925
    %v930 = vld [vmem:[#allocation2 + $0x8] sm:$0xff]
    %v931 = vld [vmem:[#allocation2 + $0x10] sm:$0xff]
    %v932 = vld [vmem:[#allocation2 + $0x18] sm:$0xff]
    %v933 = vld [vmem:[#allocation2 + $0x20] sm:$0xff]
    %v934 = vld [vmem:[#allocation2 + $0x28] sm:$0xff]
    %940 = vrot.lane.b32.xlu0 %v930, 111
    %v941 = vpop.permute.xlu0 %940
    %942 = vrot.lane.b32.xlu0 %v931, 111
    %v943 = vpop.permute.xlu0 %942
    %944 = vrot.lane.b32.xlu0 %v932, 111
    %v945 = vpop.permute.xlu0 %944
    %946 = vrot.lane.b32.xlu0 %v933, 111
    %v947 = vpop.permute.xlu0 %946
    %948 = vrot.lane.b32.xlu0 %v934, 111
    %v949 = vpop.permute.xlu0 %948
    %v950 = vsel %vm462, %v941, %v943
    %v951 = vsel %vm462, %v943, %v945
    %v952 = vsel %vm462, %v945, %v947
    %v953 = vsel %vm462, %v947, %v949
    %v958 = vsel %vm443, %v950, 0.0
    %v959 = vsel %vm444, %v951, 0.0
    %v960 = vsel %vm445, %v952, 0.0
    %v961 = vsel %vm446, %v953, 0.0
    %962 = vst [vmem:[#allocation3 + $0x100] sm:$0xff] %v958
    %963 = vst [vmem:[#allocation3 + $0x108] sm:$0xff] %v959
    %964 = vst [vmem:[#allocation3 + $0x110] sm:$0xff] %v960
    %965 = vst [vmem:[#allocation3 + $0x118] sm:$0xff] %v961
    %v966 = vld [vmem:[#allocation9] sm:$0xff]
    %v967 = vld [vmem:[#allocation3] sm:$0xff]
    %v968 = vld [vmem:[#allocation3 + $0x8] sm:$0xff]
    %v969 = vld [vmem:[#allocation3 + $0x10] sm:$0xff]
    %v970 = vld [vmem:[#allocation3 + $0x18] sm:$0xff]
    %v971 = vld [vmem:[#allocation3 + $0x20] sm:$0xff]
    %v972 = vld [vmem:[#allocation3 + $0x28] sm:$0xff]
    %v973 = vld [vmem:[#allocation3 + $0x30] sm:$0xff]
    %v974 = vld [vmem:[#allocation3 + $0x38] sm:$0xff]
    %v975 = vld [vmem:[#allocation3 + $0x40] sm:$0xff]
    %v976 = vld [vmem:[#allocation3 + $0x48] sm:$0xff]
    %v977 = vld [vmem:[#allocation3 + $0x50] sm:$0xff]
    %v978 = vld [vmem:[#allocation3 + $0x58] sm:$0xff]
    %v979 = vld [vmem:[#allocation3 + $0x60] sm:$0xff]
    %v980 = vld [vmem:[#allocation3 + $0x68] sm:$0xff]
    %v981 = vld [vmem:[#allocation3 + $0x70] sm:$0xff]
    %v982 = vld [vmem:[#allocation3 + $0x78] sm:$0xff]
    %v983 = vld [vmem:[#allocation3 + $0x80] sm:$0xff]
    %v984 = vld [vmem:[#allocation3 + $0x88] sm:$0xff]
    %v985 = vld [vmem:[#allocation3 + $0x90] sm:$0xff]
    %v986 = vld [vmem:[#allocation3 + $0x98] sm:$0xff]
    %v987 = vld [vmem:[#allocation3 + $0xa0] sm:$0xff]
    %v988 = vld [vmem:[#allocation3 + $0xa8] sm:$0xff]
    %v989 = vld [vmem:[#allocation3 + $0xb0] sm:$0xff]
    %v990 = vld [vmem:[#allocation3 + $0xb8] sm:$0xff]
    %v991 = vld [vmem:[#allocation3 + $0xc0] sm:$0xff]
    %v992 = vld [vmem:[#allocation3 + $0xc8] sm:$0xff]
    %v993 = vld [vmem:[#allocation3 + $0xd0] sm:$0xff]
    %v994 = vld [vmem:[#allocation3 + $0xd8] sm:$0xff]
    %v995 = vld [vmem:[#allocation3 + $0xe0] sm:$0xff]
    %v996 = vld [vmem:[#allocation3 + $0xe8] sm:$0xff]
    %v997 = vld [vmem:[#allocation3 + $0xf0] sm:$0xff]
    %v998 = vld [vmem:[#allocation3 + $0xf8] sm:$0xff]
    %v999 = vld [vmem:[#allocation3 + $0x100] sm:$0xff]
    %v1000 = vld [vmem:[#allocation3 + $0x108] sm:$0xff]
    %v1001 = vld [vmem:[#allocation3 + $0x110] sm:$0xff]
    %v1002 = vld [vmem:[#allocation3 + $0x118] sm:$0xff]
    %v1003 = vld [vmem:[#allocation3 + $0x120] sm:$0xff]
    %v1004 = vld [vmem:[#allocation3 + $0x128] sm:$0xff]
    %v1005 = vld [vmem:[#allocation3 + $0x130] sm:$0xff]
    %v1006 = vld [vmem:[#allocation3 + $0x138] sm:$0xff]
    %v1008 = vsel %vm520, %v966, 0
    %1010 = vmatprep.subr.mxu0 0.0
    %1011 = vmatpush1.msra.mxu0 0.0
    %1012 = vmatprep.subr.mxu0 0.0
    %1013 = vmatpush1.msra.mxu0 0.0
    %1014 = vmatprep.subr.mxu0 0.0
    %1015 = vmatpush1.msra.mxu0 0.0
    %1016 = vmatprep.subr.mxu0 0.0
    %1017 = vmatpush1.msra.mxu0 0.0
    %1018 = vmatprep.subr.mxu0 0.0
    %1019 = vmatpush1.msra.mxu0 0.0
    %1020 = vmatprep.subr.mxu0 0.0
    %1021 = vmatpush1.msra.mxu0 0.0
    %1022 = vmatprep.subr.mxu0 %v1004
    %1023 = vmatpush1.msra.mxu0 %v1003
    %1024 = vmatprep.subr.mxu0 %v1000
    %1025 = vmatpush1.msra.mxu0 %v999
    %1026 = vmatprep.subr.mxu0 %v996
    %1027 = vmatpush1.msra.mxu0 %v995
    %1028 = vmatprep.subr.mxu0 %v992
    %1029 = vmatpush1.msra.mxu0 %v991
    %1030 = vmatprep.subr.mxu0 %v988
    %1031 = vmatpush1.msra.mxu0 %v987
    %1032 = vmatprep.subr.mxu0 %v984
    %1033 = vmatpush1.msra.mxu0 %v983
    %1034 = vmatprep.subr.mxu0 %v980
    %1035 = vmatpush1.msra.mxu0 %v979
    %1036 = vmatprep.subr.mxu0 %v976
    %1037 = vmatpush1.msra.mxu0 %v975
    %1038 = vmatprep.subr.mxu0 %v972
    %1039 = vmatpush1.msra.mxu0 %v971
    %1040 = vmatprep.subr.mxu0 %v968
    %1041 = vmatpush1.msra.mxu0 %v967
    %1042 = vmatprep.subr.mxu0 0.0
    %1043 = vmatpush2.msra.mxu0 0.0
    %1044 = vmatprep.subr.mxu0 0.0
    %1045 = vmatpush2.msra.mxu0 0.0
    %1046 = vmatprep.subr.mxu0 0.0
    %1047 = vmatpush2.msra.mxu0 0.0
    %1048 = vmatprep.subr.mxu0 0.0
    %1049 = vmatpush2.msra.mxu0 0.0
    %1050 = vmatprep.subr.mxu0 0.0
    %1051 = vmatpush2.msra.mxu0 0.0
    %1052 = vmatprep.subr.mxu0 0.0
    %1053 = vmatpush2.msra.mxu0 0.0
    %1054 = vmatprep.subr.mxu0 0.0
    %1055 = vmatpush2.msra.mxu0 0.0
    %1056 = vmatprep.subr.mxu0 0.0
    %1057 = vmatpush2.msra.mxu0 0.0
    %1058 = vmatprep.subr.mxu0 0.0
    %1059 = vmatpush2.msra.mxu0 0.0
    %1060 = vmatprep.subr.mxu0 0.0
    %1061 = vmatpush2.msra.mxu0 0.0
    %1062 = vmatprep.subr.mxu0 0.0
    %1063 = vmatpush2.msra.mxu0 0.0
    %1064 = vmatprep.subr.mxu0 0.0
    %1065 = vmatpush2.msra.mxu0 0.0
    %1066 = vmatprep.subr.mxu0 0.0
    %1067 = vmatpush2.msra.mxu0 0.0
    %1068 = vmatprep.subr.mxu0 0.0
    %1069 = vmatpush2.msra.mxu0 0.0
    %1070 = vmatprep.subr.mxu0 0.0
    %1071 = vmatpush2.msra.mxu0 0.0
    %1072 = vmatprep.subr.mxu0 0.0
    %1073 = vmatpush2.msra.mxu0 0.0
    %1074 = vmatprep.mubr.f32.mxu0 0.0
    %1075 = vmatmul.mubr.f32.gmra.mxu0 %v1008
    %v1076 = vpop.f32.mrf.mxu0
    %v1077 = vadd.f32 %v91, %v1076
    %v1078 = vpop.f32.mrf.mxu0
    %v1079 = vadd.f32 %v92, %v1078
    %1080 = vdwg.mxu0
    %1081 = vmatprep.subr.mxu0 0.0
    %1082 = vmatpush1.msra.mxu0 0.0
    %1083 = vmatprep.subr.mxu0 0.0
    %1084 = vmatpush1.msra.mxu0 0.0
    %1085 = vmatprep.subr.mxu0 0.0
    %1086 = vmatpush1.msra.mxu0 0.0
    %1087 = vmatprep.subr.mxu0 0.0
    %1088 = vmatpush1.msra.mxu0 0.0
    %1089 = vmatprep.subr.mxu0 0.0
    %1090 = vmatpush1.msra.mxu0 0.0
    %1091 = vmatprep.subr.mxu0 0.0
    %1092 = vmatpush1.msra.mxu0 0.0
    %1093 = vmatprep.subr.mxu0 %v1006
    %1094 = vmatpush1.msra.mxu0 %v1005
    %1095 = vmatprep.subr.mxu0 %v1002
    %1096 = vmatpush1.msra.mxu0 %v1001
    %1097 = vmatprep.subr.mxu0 %v998
    %1098 = vmatpush1.msra.mxu0 %v997
    %1099 = vmatprep.subr.mxu0 %v994
    %1100 = vmatpush1.msra.mxu0 %v993
    %1101 = vmatprep.subr.mxu0 %v990
    %1102 = vmatpush1.msra.mxu0 %v989
    %1103 = vmatprep.subr.mxu0 %v986
    %1104 = vmatpush1.msra.mxu0 %v985
    %1105 = vmatprep.subr.mxu0 %v982
    %1106 = vmatpush1.msra.mxu0 %v981
    %1107 = vmatprep.subr.mxu0 %v978
    %1108 = vmatpush1.msra.mxu0 %v977
    %1109 = vmatprep.subr.mxu0 %v974
    %1110 = vmatpush1.msra.mxu0 %v973
    %1111 = vmatprep.subr.mxu0 %v970
    %1112 = vmatpush1.msra.mxu0 %v969
    %1113 = vmatprep.subr.mxu0 0.0
    %1114 = vmatpush2.msra.mxu0 0.0
    %1115 = vmatprep.subr.mxu0 0.0
    %1116 = vmatpush2.msra.mxu0 0.0
    %1117 = vmatprep.subr.mxu0 0.0
    %1118 = vmatpush2.msra.mxu0 0.0
    %1119 = vmatprep.subr.mxu0 0.0
    %1120 = vmatpush2.msra.mxu0 0.0
    %1121 = vmatprep.subr.mxu0 0.0
    %1122 = vmatpush2.msra.mxu0 0.0
    %1123 = vmatprep.subr.mxu0 0.0
    %1124 = vmatpush2.msra.mxu0 0.0
    %1125 = vmatprep.subr.mxu0 0.0
    %1126 = vmatpush2.msra.mxu0 0.0
    %1127 = vmatprep.subr.mxu0 0.0
    %1128 = vmatpush2.msra.mxu0 0.0
    %1129 = vmatprep.subr.mxu0 0.0
    %1130 = vmatpush2.msra.mxu0 0.0
    %1131 = vmatprep.subr.mxu0 0.0
    %1132 = vmatpush2.msra.mxu0 0.0
    %1133 = vmatprep.subr.mxu0 0.0
    %1134 = vmatpush2.msra.mxu0 0.0
    %1135 = vmatprep.subr.mxu0 0.0
    %1136 = vmatpush2.msra.mxu0 0.0
    %1137 = vmatprep.subr.mxu0 0.0
    %1138 = vmatpush2.msra.mxu0 0.0
    %1139 = vmatprep.subr.mxu0 0.0
    %1140 = vmatpush2.msra.mxu0 0.0
    %1141 = vmatprep.subr.mxu0 0.0
    %1142 = vmatpush2.msra.mxu0 0.0
    %1143 = vmatprep.subr.mxu0 0.0
    %1144 = vmatpush2.msra.mxu0 0.0
    %1145 = vmatprep.mubr.f32.mxu0 0.0
    %1146 = vmatmul.mubr.f32.gmra.mxu0 %v1008
    %v1147 = vpop.f32.mrf.mxu0
    %v1148 = vadd.f32 %v93, %v1147
    %v1149 = vpop.f32.mrf.mxu0
    %v1150 = vadd.f32 %v94, %v1149
    %1151 = vdwg.mxu0
    %v1152 = vmax.f32 %v1077, 0.0
    %v1153 = vmax.f32 %v1079, 0.0
    %v1154 = vmax.f32 %v1148, 0.0
    %v1155 = vmax.f32 %v1150, 0.0
    %1156 = vst [vmem:[#allocation10] sm:$0xff] %v1152
    %1157 = vst [vmem:[#allocation10 + $0x8] sm:$0xff] %v1153
    %1158 = vst [vmem:[#allocation10 + $0x10] sm:$0xff] %v1154
    %1159 = vst [vmem:[#allocation10 + $0x18] sm:$0xff] %v1155
    // Predicated region
    $region26: #{tpu_custom_call.1} parent=1 // pred_check
      _
    $region27: #{tpu_custom_call.1} parent=1 // pred_check_branch
      %1161 = sbr.rel (0) target = $region29
    $region28: #{tpu_custom_call.1} parent=1 // pred_region
      %s1163 = ssub.s32 512, 512
      %1164 = vsyncadd [#allocation6], %s1163
      %s1166 = sshll.u32 [#allocation10], 4
      %s1167 = int_to_ptr.vmem [resolvable:$true] %s1166
      %1169 = dma.vmem_to_hbm [thread:$0]  %s1167, 512, %s3, [#allocation6]
    $region29: #{tpu_custom_call.1} parent=1 // pred_fallthru
      _
    // Predicated region
    $region30: #{tpu_custom_call.1} parent=1 // pred_check
      _
    $region31: #{tpu_custom_call.1} parent=1 // pred_check_branch
      %1171 = sbr.rel (0) target = $region33
    $region32: #{tpu_custom_call.1} parent=1 // pred_region
      %1172 = dma.done [#allocation6], 512
    $region33: #{tpu_custom_call.1} parent=1 // pred_fallthru
      _
    %1173 = vsyncpa [#allocation5], 1
    %1174 = vsyncpa [#allocation8], 1
    %1175 = vsyncpa [#allocation6], 1

</llo_original>
